<compile_context>
chip_gen: v7x
topology: tpu7x:2x2x1
jax: 0.10.0
libtpu: 0.0.40
codegen_flags: <defaults>
</compile_context>

<pallas_src>
import functools

import jax
import jax.numpy as jnp
from jax.experimental import pallas as pl
from jax.experimental.pallas import tpu as pltpu


def autopad(k, p=None, d=1):
    if d > 1:
        k = d * (k - 1) + 1 if isinstance(k, int) else [d * (x - 1) + 1 for x in k]
    if p is None:
        p = k // 2 if isinstance(k, int) else [x // 2 for x in k]
    return p


def _round_up(a, b):
    return (a + b - 1) // b * b


def _cdiv(a, b):
    return -(-a // b)


# ----------------------------- Pallas kernel ------------------------------- #
def _conv_bn_silu_kernel(x_ref, w_ref, b_ref, o_ref, *, tap_offsets, tm):
    """One (TM, C2p) output tile: fused-K MXU dot(s) + folded-BN bias + SiLU.

    x_ref: (1, S_in, KCp)  tap-packed padded image, flat spatial (resident/batch)
    w_ref: (T, KCp, C2p)   per-tap weights with the BN scale folded in
    b_ref: (1, C2p)        folded BN bias (f32)
    o_ref: (1, TM, C2p)    dense (stride-1) conv output tile
    """
    m0 = pl.multiple_of(pl.program_id(1) * tm, 8)
    y = None
    for t, off in enumerate(tap_offsets):
        # Per-tap load straight from the ref: nothing big stays live across the
        # loop (review item 1).  For the demo (stem layer) T == 1 -> single dot.
        piece = x_ref[0, pl.ds(m0 + off, tm), :]           # (tm, KCp)
        prec = (jax.lax.Precision.HIGHEST
                if piece.dtype == jnp.float32 else None)
        part = jnp.dot(piece, w_ref[t],
                       preferred_element_type=jnp.float32, precision=prec)
        y = part if y is None else y + part
    y = y + b_ref[...]                                      # folded BN bias (f32)
    sig = 1.0 / (1.0 + jnp.exp(-y))                         # exact sigmoid (EUP exp)
    o_ref[0] = (y * sig).astype(o_ref.dtype)


# ------------------------------- wrapper ------------------------------------ #
@functools.partial(jax.jit,
                   static_argnames=("k", "s", "p", "d", "compute_dtype"))
def conv_forward(x_nchw, weight, gamma, beta, running_mean, running_var,
                 *, k, s, p, d, eps=1e-5, compute_dtype=jnp.bfloat16):
    """Equivalent of Conv.forward (g=1, eval-mode BN): SiLU(BN(Conv2d(x)))."""
    N, C1, H, W = x_nchw.shape
    C2 = weight.shape[0]
    assert weight.shape[1] == C1, "grouped conv (g>1) not supported"

    H_pad, W_pad = H + 2 * p, W + 2 * p
    H_dense = H_pad - d * (k - 1)          # stride-1 (dense) output height
    W_dense = W_pad - d * (k - 1)
    assert H_dense > 0 and W_dense > 0

    # ---- fold eval-mode BatchNorm into a weight scale + a single bias ------
    scale = gamma / jnp.sqrt(running_var + eps)                       # (C2,)
    bias = beta - running_mean * scale                                # (C2,)
    C2p = _round_up(C2, 128)               # lane-dense output channels

    # ---- decide how many conv taps to pack into the channel (lane) dim -----
    # Packing keeps the MXU contraction K large (fuse the tiny-K dots) and is
    # lane-density-free while the packed width fits one 128-lane tile: small C1
    # inputs are lane-padded to 128 in VMEM anyway (review items 2, 7, 9).
    if k * k * C1 <= 128:
        pack_h, pack_w = k, k              # all taps packed -> single wide-K dot
    elif k * C1 <= 128:
        pack_h, pack_w = 1, k              # pack kj only -> k taps of K = k*C1
    else:
        pack_h, pack_w = 1, 1              # large C1 -> k*k taps of K = C1
    taps_h = [0] if pack_h == k else list(range(k))
    taps_w = [0] if pack_w == k else list(range(k))
    KC = pack_h * pack_w * C1
    KCp = _round_up(KC, 8)

    # ---- weights: (C2,C1,kh,kw)*scale -> (T, KCp, C2p), contraction-major ---
    wt = jnp.transpose(weight * scale[:, None, None, None], (2, 3, 1, 0))  # (k,k,C1,C2)
    w_taps = []
    for ti in taps_h:
        for tj in taps_w:
            blocks = [wt[ti + ki, tj + kj]
                      for ki in range(pack_h) for kj in range(pack_w)]     # (C1,C2)
            w_taps.append(blocks[0] if len(blocks) == 1
                          else jnp.concatenate(blocks, axis=0))            # (KC,C2)
    w3 = jnp.stack(w_taps, axis=0)                                         # (T,KC,C2)
    w3 = jnp.pad(w3, ((0, 0), (0, KCp - KC), (0, C2p - C2)))
    T = w3.shape[0]
    bias_p = jnp.pad(bias, (0, C2p - C2)).reshape(1, C2p).astype(jnp.float32)

    # ---- NCHW -> NHWC, zero-pad, pack taps into channels, flatten spatial ---
    x_nhwc = jnp.transpose(x_nchw, (0, 2, 3, 1))
    x_p = jnp.pad(x_nhwc, ((0, 0), (p, p), (p, p), (0, 0)))
    groups = []
    for ki in range(pack_h):
        for kj in range(pack_w):
            sh, sw = ki * d, kj * d
            xs = x_p[:, sh:, sw:, :]
            if sh or sw:
                xs = jnp.pad(xs, ((0, 0), (0, sh), (0, sw), (0, 0)))
            groups.append(xs)
    x_pack = groups[0] if len(groups) == 1 else jnp.concatenate(groups, axis=-1)
    if KCp != KC:
        x_pack = jnp.pad(x_pack, ((0, 0), (0, 0), (0, 0), (0, KCp - KC)))
    x_flat = x_pack.reshape(N, H_pad * W_pad, KCp)

    # Dense-output flat grid: m = ho*W_pad + wo (wo runs over the padded width;
    # extra columns are discarded after the kernel).  Tap (ti,tj) reads the
    # constant offset ti*d*W_pad + tj*d.
    M_out = H_dense * W_pad
    TM_MAX = 256 if C2p <= 128 else 128    # keep slab + f32 result < 64 vregs
    n_tiles = _cdiv(M_out, TM_MAX)
    TM = _round_up(_cdiv(M_out, n_tiles), 8)
    M_pad = n_tiles * TM
    tap_offsets = tuple(ti * d * W_pad + tj * d for ti in taps_h for tj in taps_w)
    off_max = max(tap_offsets)
    S_in = max(H_pad * W_pad, M_pad + off_max)       # tail zero-padded input
    x_flat = jnp.pad(x_flat, ((0, 0), (0, S_in - H_pad * W_pad), (0, 0)))

    if compute_dtype is not None:          # bf16 operands = MXU-native rate
        x_flat = x_flat.astype(compute_dtype)
        w3 = w3.astype(compute_dtype)

    kernel = functools.partial(_conv_bn_silu_kernel,
                               tap_offsets=tap_offsets, tm=TM)

    item = jnp.dtype(x_flat.dtype).itemsize
    out_item = jnp.dtype(x_nchw.dtype).itemsize
    vmem_needed = 2 * (_round_up(S_in, 8) * max(KCp, 128) * item
                       + T * KCp * C2p * item
                       + TM * C2p * out_item + 128 * 4) + (4 << 20)
    cost = pl.CostEstimate(
        flops=2 * N * M_pad * T * KCp * C2p,
        transcendentals=N * M_pad * C2p,
        bytes_accessed=(x_flat.size * item + w3.size * item
                        + bias_p.size * 4 + N * M_pad * C2p * out_item))

    out = pl.pallas_call(
        kernel,
        out_shape=jax.ShapeDtypeStruct((N, M_pad, C2p), x_nchw.dtype),
        grid_spec=pltpu.PrefetchScalarGridSpec(
            num_scalar_prefetch=0,
            grid=(N, M_pad // TM),
            in_specs=[
                # full packed image per batch; resident across the M axis
                pl.BlockSpec((1, S_in, KCp), lambda n, m: (n, 0, 0)),
                pl.BlockSpec((T, KCp, C2p), lambda n, m: (0, 0, 0)),
                pl.BlockSpec((1, C2p), lambda n, m: (0, 0)),
            ],
            out_specs=pl.BlockSpec((1, TM, C2p), lambda n, m: (n, m, 0)),
        ),
        compiler_params=pltpu.CompilerParams(
            dimension_semantics=("parallel", "parallel"),
            vmem_limit_bytes=int(min(64 << 20, max(32 << 20, vmem_needed)))),
        cost_estimate=cost,
    )(x_flat, w3, bias_p)

    # Strip M/C2 padding, drop garbage W columns, apply stride, back to NCHW.
    out = out[:, :M_out, :C2].reshape(N, H_dense, W_pad, C2)[:, :, :W_dense, :]
    if s > 1:
        out = out[:, ::s, ::s, :]
    return jnp.transpose(out, (0, 3, 1, 2))


# ------------------------------- reference --------------------------------- #
def conv_reference(x_nchw, weight, gamma, beta, running_mean, running_var,
                   *, k, s, p, d, eps=1e-5):
    y = jax.lax.conv_general_dilated(
        x_nchw, weight,
        window_strides=(s, s),
        padding=((p, p), (p, p)),
        rhs_dilation=(d, d),
        dimension_numbers=("NCHW", "OIHW", "NCHW"),
        precision=jax.lax.Precision.HIGHEST)
    scale = gamma / jnp.sqrt(running_var + eps)
    bias = beta - running_mean * scale
    y = y * scale[None, :, None, None] + bias[None, :, None, None]
    return y * jax.nn.sigmoid(y)


if __name__ == "__main__":
    # Conv(c1=4, c2=8, k=3, s=1) -> autopad p=1, d=1, g=1
    c1, c2, k, s, d = 4, 8, 3, 1, 1
    p = autopad(k, None, d)

    key = jax.random.PRNGKey(0)
    kx, kw, kg, kb, km, kv = jax.random.split(key, 6)

    x = jax.random.normal(kx, (2, c1, 16, 16), dtype=jnp.float32)
    weight = jax.random.normal(kw, (c2, c1, k, k), dtype=jnp.float32) * 0.1
    gamma = 1.0 + 0.1 * jax.random.normal(kg, (c2,), dtype=jnp.float32)
    beta = 0.1 * jax.random.normal(kb, (c2,), dtype=jnp.float32)
    running_mean = 0.1 * jax.random.normal(km, (c2,), dtype=jnp.float32)
    running_var = jnp.abs(1.0 + 0.1 * jax.random.normal(kv, (c2,), dtype=jnp.float32))

    ref = conv_reference(x, weight, gamma, beta, running_mean, running_var,
                         k=k, s=s, p=p, d=d)

    # Full-precision matmul path (exact sigmoid + HIGHEST-precision dots).
    out_f32 = conv_forward(x, weight, gamma, beta, running_mean, running_var,
                           k=k, s=s, p=p, d=d, compute_dtype=jnp.float32)
    out_f32 = jax.block_until_ready(out_f32)
    assert out_f32.shape == (2, c2, 16, 16), out_f32.shape
    err_f32 = float(jnp.max(jnp.abs(out_f32 - ref)))
    # typical error is ~1e-5; tolerance leaves headroom for any reduced-precision
    # MXU pass the backend may still pick for f32 operands.
    assert err_f32 < 1e-2, err_f32

    # Default path: bf16 matmul operands (MXU-native), f32 accumulate/epilogue.
    out_bf16 = conv_forward(x, weight, gamma, beta, running_mean, running_var,
                            k=k, s=s, p=p, d=d)
    out_bf16 = jax.block_until_ready(out_bf16)
    err_bf16 = float(jnp.max(jnp.abs(out_bf16 - ref)))
    assert err_bf16 < 5e-2, err_bf16

    print("KERNEL_OK")
</pallas_src>

<mosaic_0001>
module attributes {stable_mosaic.version = 11 : i64} {
  func.func @_conv_bn_silu_kernel(%arg0: i32, %arg1: i32, %arg2: memref<1x324x40xf32, #tpu.memory_space<vmem>>, %arg3: memref<1x40x128xf32, #tpu.memory_space<vmem>>, %arg4: memref<1x128xf32, #tpu.memory_space<vmem>>, %arg5: memref<1x144x128xf32, #tpu.memory_space<vmem>>) attributes {dimension_semantics = [#tpu.dimension_semantics<parallel>, #tpu.dimension_semantics<parallel>], iteration_bounds = array<i64: 2, 2>, scalar_prefetch = 0 : i64, scratch_operands = 0 : i64, tpu.core_type = #tpu.core_type<tc>, window_params = [{transform_indices = @transform_0, window_bounds = array<i64: 1, 324, 40>}, {pipeline_mode = #tpu.pipeline_mode<synchronous>, transform_indices = @transform_1, window_bounds = array<i64: 1, 40, 128>}, {pipeline_mode = #tpu.pipeline_mode<synchronous>, transform_indices = @transform_2, window_bounds = array<i64: 1, 128>}, {transform_indices = @transform_3, window_bounds = array<i64: 1, 144, 128>}]} {
    %c144_i32 = arith.constant 144 : i32
    %0 = arith.muli %arg1, %c144_i32 : i32
    %1 = tpu.assume_multiple %0, 8 : i32
    %c0_i32 = arith.constant 0 : i32
    %2 = arith.addi %1, %c0_i32 : i32
    %c0 = arith.constant 0 : index
    %3 = arith.index_cast %2 : i32 to index
    %c0_0 = arith.constant 0 : index
    %4 = vector.load %arg2[%c0, %3, %c0_0] : memref<1x324x40xf32, #tpu.memory_space<vmem>>, vector<1x144x40xf32>
    %5 = vector.shape_cast %4 : vector<1x144x40xf32> to vector<144x40xf32>
    %c0_1 = arith.constant 0 : index
    %c0_2 = arith.constant 0 : index
    %c0_3 = arith.constant 0 : index
    %6 = vector.load %arg3[%c0_1, %c0_2, %c0_3] : memref<1x40x128xf32, #tpu.memory_space<vmem>>, vector<1x40x128xf32>
    %7 = vector.shape_cast %6 : vector<1x40x128xf32> to vector<40x128xf32>
    %cst = arith.constant dense<0.000000e+00> : vector<144x128xf32>
    %8 = tpu.matmul %5, %7, %cst {dimension_numbers = #tpu.dot_dimension_numbers<[1], [0], [0], [1], [0, 0, 1, 1], [], []>, precision = #tpu.contract_precision<fp32>} : vector<144x40xf32>, vector<40x128xf32>, vector<144x128xf32> -> vector<144x128xf32>
    %c0_4 = arith.constant 0 : index
    %c0_5 = arith.constant 0 : index
    %9 = vector.load %arg4[%c0_4, %c0_5] : memref<1x128xf32, #tpu.memory_space<vmem>>, vector<1x128xf32>
    %10 = vector.broadcast %9 : vector<1x128xf32> to vector<144x128xf32>
    %11 = arith.addf %8, %10 : vector<144x128xf32>
    %cst_6 = arith.constant 0.000000e+00 : f32
    %12 = vector.broadcast %cst_6 : f32 to vector<144x128xf32>
    %13 = arith.subf %12, %11 : vector<144x128xf32>
    %14 = math.exp %13 : vector<144x128xf32>
    %cst_7 = arith.constant 1.000000e+00 : f32
    %15 = vector.broadcast %cst_7 : f32 to vector<144x128xf32>
    %16 = arith.addf %15, %14 : vector<144x128xf32>
    %cst_8 = arith.constant 1.000000e+00 : f32
    %17 = vector.broadcast %cst_8 : f32 to vector<144x128xf32>
    %18 = arith.divf %17, %16 : vector<144x128xf32>
    %19 = arith.mulf %11, %18 : vector<144x128xf32>
    %c0_9 = arith.constant 0 : index
    %c0_10 = arith.constant 0 : index
    %c0_11 = arith.constant 0 : index
    %20 = vector.load %arg5[%c0_9, %c0_10, %c0_11] : memref<1x144x128xf32, #tpu.memory_space<vmem>>, vector<1x144x128xf32>
    %21 = vector.shape_cast %20 : vector<1x144x128xf32> to vector<144x128xf32>
    %22 = vector.shape_cast %19 : vector<144x128xf32> to vector<1x144x128xf32>
    tpu.vector_store %arg5[%c0_9, %c0_10, %c0_11], %22 {strides = array<i32>} : memref<1x144x128xf32, #tpu.memory_space<vmem>>, vector<1x144x128xf32>,
    return
  }
  func.func @transform_0(%arg0: i32, %arg1: i32) -> (i32, i32, i32) {
    %c0_i32 = arith.constant 0 : i32
    %c0_i32_0 = arith.constant 0 : i32
    %c0_i32_1 = arith.constant 0 : i32
    return %arg0, %c0_i32, %c0_i32_0 : i32, i32, i32
  }
  func.func @transform_1(%arg0: i32, %arg1: i32) -> (i32, i32, i32) {
    %c0_i32 = arith.constant 0 : i32
    %c0_i32_0 = arith.constant 0 : i32
    %c0_i32_1 = arith.constant 0 : i32
    %c0_i32_2 = arith.constant 0 : i32
    return %c0_i32, %c0_i32_0, %c0_i32_1 : i32, i32, i32
  }
  func.func @transform_2(%arg0: i32, %arg1: i32) -> (i32, i32) {
    %c0_i32 = arith.constant 0 : i32
    %c0_i32_0 = arith.constant 0 : i32
    %c0_i32_1 = arith.constant 0 : i32
    return %c0_i32, %c0_i32_0 : i32, i32
  }
  func.func @transform_3(%arg0: i32, %arg1: i32) -> (i32, i32, i32) {
    %c0_i32 = arith.constant 0 : i32
    %c0_i32_0 = arith.constant 0 : i32
    return %arg0, %arg1, %c0_i32 : i32, i32, i32
  }
}

</mosaic_0001>

<llo_original>
// kernel: conv_forward.1
$region0: #{conv_forward.1}
  #allocation0 [shape = 'u32[]', space=smem, size = 0x4, offset = 0x4, fixed_abs, tag = 'smem constant byte address 0x4 - core index']
  #allocation1 [shape = 'u32[144,128]{1,0:T(1,128)}', space=vmem, size = 0x12000, scoped, tag = 'internal scratch']
  %s0 = inlined_call_operand.vmem [shape: f32[2,324,40], index: 0, kind: input, shape index: {}]
  %s1 = inlined_call_operand.vmem [shape: f32[1,40,128], index: 1, kind: input, shape index: {}]
  %s2 = inlined_call_operand.vmem [shape: f32[1,128], index: 2, kind: input, shape index: {}]
  %s3 = inlined_call_operand.vmem [shape: f32[2,288,128], index: 3, kind: output, shape index: {}]
  %s4 = sld [smem:[#allocation0]]
  $region45: #{conv_forward.1} parent=0
    _
  %s6 = ssub.s32 1, %s4
  %s7 = scalar_select 0, %s6, %s4
  loop: start=0, step=1, limit=6
  $region2: #{conv_forward.1} parent=0 // loop_pre_header
    _
  $region3: #{conv_forward.1} parent=0 // loop_header
    %s9 = sphi 0, %s13
    %p10 = scmp.ge.s32.totalorder %s9, 6
    %s16 = sphi 0, %s28
    %s17 = sphi 0, %s24
    %s18 = sphi 0, %s16
    %s19 = sphi 0, %s17
    %s20 = sphi 0, %s18
    %s21 = sphi 0, %s19
    %s31 = sphi 0, %s33
    %s34 = sphi 0, %s31
    %s35 = sphi 0, %s34
    %s51 = sphi 0, %s35
    %s55 = sphi 0, %s55
    %s57 = sphi 0, %s55
    %s58 = sphi 0, %s57
    %s72 = sphi 0, %s58
    %s76 = sphi 0, %s76
    %s78 = sphi 0, %s76
    %s79 = sphi 0, %s78
    %s93 = sphi 0, %s79
    %s101 = sphi 0, %s103
    %s104 = sphi 0, %s101
    %s105 = sphi 0, %s104
    %s121 = sphi 0, %s105
  $region4: #{conv_forward.1} parent=0 // loop_header_branch
    %12 = sbr.rel (%p10) target = $region8
  $region5: #{conv_forward.1} parent=0 // loop_body
    %s14 = ssub.s32 %s9, 1
    %s15 = ssub.s32 %s9, 2
    %s22 = sadd.s32 1, %s17
    %p23 = scmp.ge.s32.totalorder %s22, 2
    %s24 = scalar_select %p23, 0, %s22
    %s25 = sadd.s32 1, %s16
    %s26 = scalar_select %p23, %s25, %s16
    %p27 = scmp.ge.s32.totalorder %s26, 2
    %s28 = scalar_select %p27, 0, %s26
    %s29 = ssub.s32 %s16, %s28
    %p30 = scmp.eq.s32.totalorder %s29, 0
    %s32 = sadd.s32 %s31, 1
    %s33 = scalar_select %p30, %s31, %s32
    %p36 = pneg %p30
    %p37 = scmp.eq.s32.totalorder %s9, 3
    %p38 = por %p36, %p37
    %p39 = scmp.ne.s32.totalorder %s31, %s34
    %p40 = scmp.eq.s32.totalorder %s9, 0
    %p41 = por %p39, %p40
    %p42 = scmp.ne.s32.totalorder %s31, %s34
    %p43 = scmp.eq.s32.totalorder %s14, 3
    %p44 = por %p42, %p43
    %p45 = scmp.ne.s32.totalorder %s34, %s35
    %p46 = scmp.eq.s32.totalorder %s14, 0
    %p47 = por %p45, %p46
    %p48 = scmp.ne.s32.totalorder %s34, %s35
    %p49 = scmp.eq.s32.totalorder %s15, 3
    %p50 = por %p48, %p49
    %p52 = scmp.ne.s32.totalorder %s35, %s51
    %p53 = scmp.eq.s32.totalorder %s15, 0
    %p54 = por %p52, %p53
    %s56 = sadd.s32 %s55, 1
    %p59 = scmp.eq.s32.totalorder %s9, 3
    %p60 = scmp.ne.s32.totalorder %s55, %s57
    %p61 = scmp.eq.s32.totalorder %s9, 0
    %p62 = por %p60, %p61
    %p63 = scmp.ne.s32.totalorder %s55, %s57
    %p64 = scmp.eq.s32.totalorder %s14, 3
    %p65 = por %p63, %p64
    %p66 = scmp.ne.s32.totalorder %s57, %s58
    %p67 = scmp.eq.s32.totalorder %s14, 0
    %p68 = por %p66, %p67
    %p69 = scmp.ne.s32.totalorder %s57, %s58
    %p70 = scmp.eq.s32.totalorder %s15, 3
    %p71 = por %p69, %p70
    %p73 = scmp.ne.s32.totalorder %s58, %s72
    %p74 = scmp.eq.s32.totalorder %s15, 0
    %p75 = por %p73, %p74
    %s77 = sadd.s32 %s76, 1
    %p80 = scmp.eq.s32.totalorder %s9, 3
    %p81 = scmp.ne.s32.totalorder %s76, %s78
    %p82 = scmp.eq.s32.totalorder %s9, 0
    %p83 = por %p81, %p82
    %p84 = scmp.ne.s32.totalorder %s76, %s78
    %p85 = scmp.eq.s32.totalorder %s14, 3
    %p86 = por %p84, %p85
    %p87 = scmp.ne.s32.totalorder %s78, %s79
    %p88 = scmp.eq.s32.totalorder %s14, 0
    %p89 = por %p87, %p88
    %p90 = scmp.ne.s32.totalorder %s78, %s79
    %p91 = scmp.eq.s32.totalorder %s15, 3
    %p92 = por %p90, %p91
    %p94 = scmp.ne.s32.totalorder %s79, %s93
    %p95 = scmp.eq.s32.totalorder %s15, 0
    %p96 = por %p94, %p95
    %s97 = ssub.s32 %s16, %s28
    %s98 = ssub.s32 %s17, %s24
    %s99 = sor.u32 %s97, %s98
    %p100 = scmp.eq.s32.totalorder %s99, 0
    %s102 = sadd.s32 %s101, 1
    %s103 = scalar_select %p100, %s101, %s102
    %p106 = pneg %p100
    %p107 = scmp.eq.s32.totalorder %s9, 3
    %p108 = por %p106, %p107
    %p109 = scmp.ne.s32.totalorder %s101, %s104
    %p110 = scmp.eq.s32.totalorder %s9, 0
    %p111 = por %p109, %p110
    %p112 = scmp.ne.s32.totalorder %s101, %s104
    %p113 = scmp.eq.s32.totalorder %s14, 3
    %p114 = por %p112, %p113
    %p115 = scmp.ne.s32.totalorder %s104, %s105
    %p116 = scmp.eq.s32.totalorder %s14, 0
    %p117 = por %p115, %p116
    %p118 = scmp.ne.s32.totalorder %s104, %s105
    %p119 = scmp.eq.s32.totalorder %s15, 3
    %p120 = por %p118, %p119
    %p122 = scmp.ne.s32.totalorder %s105, %s121
    %p123 = scmp.eq.s32.totalorder %s15, 0
    %p124 = por %p122, %p123
    %p125 = scmp.le.s32.totalorder 1, %s9
    %p126 = scmp.lt.s32.totalorder %s9, 5
    %p127 = pnand %p125, %p126
    %p128 = pneg %p127
    // Predicated region
    $region9: #{conv_forward.1} parent=5 // pred_check
      _
    $region10: #{conv_forward.1} parent=5 // pred_check_branch
      %130 = sbr.rel (%p127) target = $region12
    $region11: #{conv_forward.1} parent=5 // pred_region
      %s131 = ssub.s32 %s9, 1
      // Predicated region
      $region13: #{conv_forward.1} parent=11 // pred_check
        %p132 = pneg %p68
      $region14: #{conv_forward.1} parent=11 // pred_check_branch
        %134 = sbr.rel (%p132) target = $region16
      $region15: #{conv_forward.1} parent=11 // pred_region
        _
      $region16: #{conv_forward.1} parent=11 // pred_fallthru
        _
      // Predicated region
      $region17: #{conv_forward.1} parent=11 // pred_check
        %p135 = pneg %p89
      $region18: #{conv_forward.1} parent=11 // pred_check_branch
        %137 = sbr.rel (%p135) target = $region20
      $region19: #{conv_forward.1} parent=11 // pred_region
        _
      $region20: #{conv_forward.1} parent=11 // pred_fallthru
        _
    $region12: #{conv_forward.1} parent=5 // pred_fallthru
      _
    %p138 = scmp.lt.s32.totalorder %s9, 4
    // Predicated region
    $region21: #{conv_forward.1} parent=5 // pred_check
      %p139 = pneg %p138
    $region22: #{conv_forward.1} parent=5 // pred_check_branch
      %141 = sbr.rel (%p139) target = $region24
    $region23: #{conv_forward.1} parent=5 // pred_region
      // Predicated region
      $region25: #{conv_forward.1} parent=23 // pred_check
        %p142 = pneg %p41
      $region26: #{conv_forward.1} parent=23 // pred_check_branch
        %144 = sbr.rel (%p142) target = $region28
      $region27: #{conv_forward.1} parent=23 // pred_region
        %p145 = scmp.lt.s32.totalorder %s16, 1
        %s146 = scalar_select %p145, %s16, 1
        %s147 = smul.addr %s146, 41
        %s148 = smul.addr %s147, 8
        %s149 = scalar_lea.vmem %s0, %s148
      $region28: #{conv_forward.1} parent=23 // pred_fallthru
        _
    $region24: #{conv_forward.1} parent=5 // pred_fallthru
      _
    %p150 = scmp.le.s32.totalorder 1, %s9
    %p151 = scmp.lt.s32.totalorder %s9, 5
    %p152 = pnand %p150, %p151
    %p153 = pneg %p152
    // Predicated region
    $region29: #{conv_forward.1} parent=5 // pred_check
      _
    $region30: #{conv_forward.1} parent=5 // pred_check_branch
      %155 = sbr.rel (%p152) target = $region32
    $region31: #{conv_forward.1} parent=5 // pred_region
      %s156 = ssub.s32 %s9, 1
      %p157 = scmp.lt.s32.totalorder %s18, 1
      %s158 = scalar_select %p157, %s18, 1
      %s159 = smul.addr %s158, 41
      %s160 = smul.addr %s159, 8
      %s161 = scalar_lea.vmem %s0, %s160
      %p162 = pneg %p47
      %p163 = pneg %p44
      %p164 = pneg %p68
      %p165 = pneg %p65
      %p166 = pneg %p89
      %p167 = pneg %p86
      %p168 = pneg %p117
      %p169 = pneg %p114
      %s170 = smul.u32 18, %s19
      %p171 = scmp.lt.s32.totalorder %s18, 1
      %s172 = scalar_select %p171, %s18, 1
      %p173 = scmp.lt.s32.totalorder %s170, 35
      %s174 = scalar_select %p173, %s170, 35
      %s175 = smul.addr %s172, 36
      %s176 = sadd.s32 %s174, %s175
      %s177 = smul.addr %s176, 8
      %s178 = scalar_lea.vmem %s3, %s177
      %p179 = scmp.lt.s32.totalorder %s18, 1
      %s180 = scalar_select %p179, %s18, 1
      %s181 = smul.addr %s180, 41
      %s182 = smul.addr %s181, 8
      %s183 = scalar_lea.vmem %s0, %s182
      %s184 = smul.u32 18, %s19
      %p185 = scmp.lt.s32.totalorder %s18, 1
      %s186 = scalar_select %p185, %s18, 1
      %p187 = scmp.lt.s32.totalorder %s184, 35
      %s188 = scalar_select %p187, %s184, 35
      %s189 = smul.addr %s186, 36
      %s190 = sadd.s32 %s188, %s189
      %s191 = smul.addr %s190, 8
      %s192 = scalar_lea.vmem %s3, %s191
      %s193 = smul.u32 18, %s19
      %s194 = smul.u32 %s19, 144
      %s195 = scalar_lea.vmem %s183, %s194
      %v196 = vld [vmem:[%s195] sm:$0xff]
      %v197 = vld [vmem:[%s195 + $0x8] sm:$0xff]
      %v198 = vld [vmem:[%s195 + $0x10] sm:$0xff]
      %v199 = vld [vmem:[%s195 + $0x18] sm:$0xff]
      %v200 = vld [vmem:[%s195 + $0x20] sm:$0xff]
      %v201 = vld [vmem:[%s195 + $0x28] sm:$0xff]
      %v202 = vld [vmem:[%s195 + $0x30] sm:$0xff]
      %v203 = vld [vmem:[%s195 + $0x38] sm:$0xff]
      %v204 = vld [vmem:[%s195 + $0x40] sm:$0xff]
      %v205 = vld [vmem:[%s195 + $0x48] sm:$0xff]
      %v206 = vld [vmem:[%s195 + $0x50] sm:$0xff]
      %v207 = vld [vmem:[%s195 + $0x58] sm:$0xff]
      %v208 = vld [vmem:[%s195 + $0x60] sm:$0xff]
      %v209 = vld [vmem:[%s195 + $0x68] sm:$0xff]
      %v210 = vld [vmem:[%s195 + $0x70] sm:$0xff]
      %v211 = vld [vmem:[%s195 + $0x78] sm:$0xff]
      %v212 = vld [vmem:[%s195 + $0x80] sm:$0xff]
      %v213 = vld [vmem:[%s195 + $0x88] sm:$0xff]
      %v214 = vld [vmem:[%s1] sm:$0xff]
      %v215 = vld [vmem:[%s1 + $0x8] sm:$0xff]
      %v216 = vld [vmem:[%s1 + $0x10] sm:$0xff]
      %v217 = vld [vmem:[%s1 + $0x18] sm:$0xff]
      %v218 = vld [vmem:[%s1 + $0x20] sm:$0xff]
      %v219 = vld [vmem:[%s2] sm:$0x1]
      %v221 = vlaneseq
      %v222 = vshrl.u32 %v221, 7
      %v223 = vsub.s32 0, %v222
      %v224 = vrot.slane %v219, %v223
      %vm226 = vcmask 326656
      %v228 = vsel %vm226, %v196, 0
      %v231 = vsel %vm226, %v197, 0
      %v234 = vsel %vm226, %v198, 0
      %v237 = vsel %vm226, %v199, 0
      %v240 = vsel %vm226, %v200, 0
      %v243 = vsel %vm226, %v201, 0
      %v246 = vsel %vm226, %v202, 0
      %v249 = vsel %vm226, %v203, 0
      %v252 = vsel %vm226, %v204, 0
      %v255 = vsel %vm226, %v205, 0
      %v258 = vsel %vm226, %v206, 0
      %v261 = vsel %vm226, %v207, 0
      %v264 = vsel %vm226, %v208, 0
      %v267 = vsel %vm226, %v209, 0
      %v270 = vsel %vm226, %v210, 0
      %v273 = vsel %vm226, %v211, 0
      %v276 = vsel %vm226, %v212, 0
      %v279 = vsel %vm226, %v213, 0
      %281 = vmatprep.subr.mxu0 0.0
      %v282 = vand.u32 %v214, 4294901760
      %283 = vmatpush1.msra.mxu0 %v282
      %284 = vmatprep.subr.mxu0 0.0
      %v285 = vand.u32 %v215, 4294901760
      %286 = vmatpush1.msra.mxu0 %v285
      %287 = vmatprep.subr.mxu0 0.0
      %v288 = vand.u32 %v216, 4294901760
      %289 = vmatpush1.msra.mxu0 %v288
      %290 = vmatprep.subr.mxu0 0.0
      %v291 = vand.u32 %v217, 4294901760
      %292 = vmatpush1.msra.mxu0 %v291
      %293 = vmatprep.subr.mxu0 0.0
      %v294 = vand.u32 %v218, 4294901760
      %295 = vmatpush1.msra.mxu0 %v294
      %296 = vmatprep.subr.mxu0 0.0
      %297 = vmatpush1.msra.mxu0 0.0
      %298 = vmatprep.subr.mxu0 0.0
      %299 = vmatpush1.msra.mxu0 0.0
      %300 = vmatprep.subr.mxu0 0.0
      %301 = vmatpush1.msra.mxu0 0.0
      %302 = vmatprep.subr.mxu0 0.0
      %303 = vmatpush1.msra.mxu0 0.0
      %304 = vmatprep.subr.mxu0 0.0
      %305 = vmatpush1.msra.mxu0 0.0
      %306 = vmatprep.subr.mxu0 0.0
      %307 = vmatpush1.msra.mxu0 0.0
      %308 = vmatprep.subr.mxu0 0.0
      %309 = vmatpush1.msra.mxu0 0.0
      %310 = vmatprep.subr.mxu0 0.0
      %311 = vmatpush1.msra.mxu0 0.0
      %312 = vmatprep.subr.mxu0 0.0
      %313 = vmatpush1.msra.mxu0 0.0
      %314 = vmatprep.subr.mxu0 0.0
      %315 = vmatpush1.msra.mxu0 0.0
      %316 = vmatprep.subr.mxu0 0.0
      %317 = vmatpush1.msra.mxu0 0.0
      %318 = vmatprep.subr.mxu0 0.0
      %319 = vmatpush1.msra.mxu0 0.0
      %320 = vmatprep.subr.mxu0 0.0
      %321 = vmatpush1.msra.mxu0 0.0
      %322 = vmatprep.subr.mxu0 0.0
      %323 = vmatpush1.msra.mxu0 0.0
      %324 = vmatprep.subr.mxu0 0.0
      %325 = vmatpush1.msra.mxu0 0.0
      %326 = vmatprep.subr.mxu0 0.0
      %327 = vmatpush1.msra.mxu0 0.0
      %328 = vmatprep.subr.mxu0 0.0
      %329 = vmatpush1.msra.mxu0 0.0
      %330 = vmatprep.subr.mxu0 0.0
      %331 = vmatpush1.msra.mxu0 0.0
      %332 = vmatprep.subr.mxu0 0.0
      %333 = vmatpush1.msra.mxu0 0.0
      %334 = vmatprep.subr.mxu0 0.0
      %335 = vmatpush1.msra.mxu0 0.0
      %336 = vmatprep.subr.mxu0 0.0
      %337 = vmatpush1.msra.mxu0 0.0
      %338 = vmatprep.subr.mxu0 0.0
      %339 = vmatpush1.msra.mxu0 0.0
      %340 = vmatprep.subr.mxu0 0.0
      %341 = vmatpush1.msra.mxu0 0.0
      %342 = vmatprep.subr.mxu0 0.0
      %343 = vmatpush1.msra.mxu0 0.0
      %344 = vmatprep.subr.mxu0 0.0
      %345 = vmatpush1.msra.mxu0 0.0
      %346 = vmatprep.subr.mxu0 0.0
      %347 = vmatpush1.msra.mxu0 0.0
      %348 = vmatprep.subr.mxu0 0.0
      %349 = vmatpush1.msra.mxu0 0.0
      %350 = vmatprep.mubr.f32.mxu0 0.0
      %v351 = vand.u32 %v228, 4294901760
      %v352 = vsub.f32 %v228, %v351
      %v353 = vand.u32 %v352, 4294901760
      %v354 = vsub.f32 %v352, %v353
      %v355 = vand.u32 %v354, 4294901760
      %356 = vmatmul.mubr.f32.gmra.mrb[0].mxu0 %v355
      %v357 = vpop.f32.mrb[0].mxu0
      %v358 = vadd.f32 %v224, %v357
      %v359 = vpop.f32.mrb[0].mxu0
      %360 = vmatprep.mubr.f32.mxu0 0.0
      %v361 = vand.u32 %v231, 4294901760
      %v362 = vsub.f32 %v231, %v361
      %v363 = vand.u32 %v362, 4294901760
      %v364 = vsub.f32 %v362, %v363
      %v365 = vand.u32 %v364, 4294901760
      %366 = vmatmul.mubr.f32.gmra.mrb[0].mxu0 %v365
      %v367 = vpop.f32.mrb[0].mxu0
      %v368 = vadd.f32 %v224, %v367
      %v369 = vpop.f32.mrb[0].mxu0
      %370 = vmatprep.mubr.f32.mxu0 0.0
      %v371 = vand.u32 %v234, 4294901760
      %v372 = vsub.f32 %v234, %v371
      %v373 = vand.u32 %v372, 4294901760
      %v374 = vsub.f32 %v372, %v373
      %v375 = vand.u32 %v374, 4294901760
      %376 = vmatmul.mubr.f32.gmra.mrb[0].mxu0 %v375
      %v377 = vpop.f32.mrb[0].mxu0
      %v378 = vadd.f32 %v224, %v377
      %v379 = vpop.f32.mrb[0].mxu0
      %380 = vmatprep.mubr.f32.mxu0 0.0
      %v381 = vand.u32 %v237, 4294901760
      %v382 = vsub.f32 %v237, %v381
      %v383 = vand.u32 %v382, 4294901760
      %v384 = vsub.f32 %v382, %v383
      %v385 = vand.u32 %v384, 4294901760
      %386 = vmatmul.mubr.f32.gmra.mrb[0].mxu0 %v385
      %v387 = vpop.f32.mrb[0].mxu0
      %v388 = vadd.f32 %v224, %v387
      %v389 = vpop.f32.mrb[0].mxu0
      %390 = vmatprep.mubr.f32.mxu0 0.0
      %v391 = vand.u32 %v240, 4294901760
      %v392 = vsub.f32 %v240, %v391
      %v393 = vand.u32 %v392, 4294901760
      %v394 = vsub.f32 %v392, %v393
      %v395 = vand.u32 %v394, 4294901760
      %396 = vmatmul.mubr.f32.gmra.mrb[0].mxu0 %v395
      %v397 = vpop.f32.mrb[0].mxu0
      %v398 = vadd.f32 %v224, %v397
      %v399 = vpop.f32.mrb[0].mxu0
      %400 = vmatprep.mubr.f32.mxu0 0.0
      %v401 = vand.u32 %v243, 4294901760
      %v402 = vsub.f32 %v243, %v401
      %v403 = vand.u32 %v402, 4294901760
      %v404 = vsub.f32 %v402, %v403
      %v405 = vand.u32 %v404, 4294901760
      %406 = vmatmul.mubr.f32.gmra.mrb[0].mxu0 %v405
      %v407 = vpop.f32.mrb[0].mxu0
      %v408 = vadd.f32 %v224, %v407
      %v409 = vpop.f32.mrb[0].mxu0
      %410 = vmatprep.mubr.f32.mxu0 0.0
      %v411 = vand.u32 %v246, 4294901760
      %v412 = vsub.f32 %v246, %v411
      %v413 = vand.u32 %v412, 4294901760
      %v414 = vsub.f32 %v412, %v413
      %v415 = vand.u32 %v414, 4294901760
      %416 = vmatmul.mubr.f32.gmra.mrb[0].mxu0 %v415
      %v417 = vpop.f32.mrb[0].mxu0
      %v418 = vadd.f32 %v224, %v417
      %v419 = vpop.f32.mrb[0].mxu0
      %420 = vmatprep.mubr.f32.mxu0 0.0
      %v421 = vand.u32 %v249, 4294901760
      %v422 = vsub.f32 %v249, %v421
      %v423 = vand.u32 %v422, 4294901760
      %v424 = vsub.f32 %v422, %v423
      %v425 = vand.u32 %v424, 4294901760
      %426 = vmatmul.mubr.f32.gmra.mrb[0].mxu0 %v425
      %v427 = vpop.f32.mrb[0].mxu0
      %v428 = vadd.f32 %v224, %v427
      %v429 = vpop.f32.mrb[0].mxu0
      %430 = vmatprep.mubr.f32.mxu0 0.0
      %v431 = vand.u32 %v252, 4294901760
      %v432 = vsub.f32 %v252, %v431
      %v433 = vand.u32 %v432, 4294901760
      %v434 = vsub.f32 %v432, %v433
      %v435 = vand.u32 %v434, 4294901760
      %436 = vmatmul.mubr.f32.gmra.mrb[0].mxu0 %v435
      %v437 = vpop.f32.mrb[0].mxu0
      %v438 = vadd.f32 %v224, %v437
      %v439 = vpop.f32.mrb[0].mxu0
      %440 = vmatprep.mubr.f32.mxu0 0.0
      %v441 = vand.u32 %v255, 4294901760
      %v442 = vsub.f32 %v255, %v441
      %v443 = vand.u32 %v442, 4294901760
      %v444 = vsub.f32 %v442, %v443
      %v445 = vand.u32 %v444, 4294901760
      %446 = vmatmul.mubr.f32.gmra.mrb[0].mxu0 %v445
      %v447 = vpop.f32.mrb[0].mxu0
      %v448 = vadd.f32 %v224, %v447
      %v449 = vpop.f32.mrb[0].mxu0
      %450 = vmatprep.mubr.f32.mxu0 0.0
      %v451 = vand.u32 %v258, 4294901760
      %v452 = vsub.f32 %v258, %v451
      %v453 = vand.u32 %v452, 4294901760
      %v454 = vsub.f32 %v452, %v453
      %v455 = vand.u32 %v454, 4294901760
      %456 = vmatmul.mubr.f32.gmra.mrb[0].mxu0 %v455
      %v457 = vpop.f32.mrb[0].mxu0
      %v458 = vadd.f32 %v224, %v457
      %v459 = vpop.f32.mrb[0].mxu0
      %460 = vmatprep.mubr.f32.mxu0 0.0
      %v461 = vand.u32 %v261, 4294901760
      %v462 = vsub.f32 %v261, %v461
      %v463 = vand.u32 %v462, 4294901760
      %v464 = vsub.f32 %v462, %v463
      %v465 = vand.u32 %v464, 4294901760
      %466 = vmatmul.mubr.f32.gmra.mrb[0].mxu0 %v465
      %v467 = vpop.f32.mrb[0].mxu0
      %v468 = vadd.f32 %v224, %v467
      %v469 = vpop.f32.mrb[0].mxu0
      %470 = vmatprep.mubr.f32.mxu0 0.0
      %v471 = vand.u32 %v264, 4294901760
      %v472 = vsub.f32 %v264, %v471
      %v473 = vand.u32 %v472, 4294901760
      %v474 = vsub.f32 %v472, %v473
      %v475 = vand.u32 %v474, 4294901760
      %476 = vmatmul.mubr.f32.gmra.mrb[0].mxu0 %v475
      %v477 = vpop.f32.mrb[0].mxu0
      %v478 = vadd.f32 %v224, %v477
      %v479 = vpop.f32.mrb[0].mxu0
      %480 = vmatprep.mubr.f32.mxu0 0.0
      %v481 = vand.u32 %v267, 4294901760
      %v482 = vsub.f32 %v267, %v481
      %v483 = vand.u32 %v482, 4294901760
      %v484 = vsub.f32 %v482, %v483
      %v485 = vand.u32 %v484, 4294901760
      %486 = vmatmul.mubr.f32.gmra.mrb[0].mxu0 %v485
      %v487 = vpop.f32.mrb[0].mxu0
      %v488 = vadd.f32 %v224, %v487
      %v489 = vpop.f32.mrb[0].mxu0
      %490 = vmatprep.mubr.f32.mxu0 0.0
      %v491 = vand.u32 %v270, 4294901760
      %v492 = vsub.f32 %v270, %v491
      %v493 = vand.u32 %v492, 4294901760
      %v494 = vsub.f32 %v492, %v493
      %v495 = vand.u32 %v494, 4294901760
      %496 = vmatmul.mubr.f32.gmra.mrb[0].mxu0 %v495
      %v497 = vpop.f32.mrb[0].mxu0
      %v498 = vadd.f32 %v224, %v497
      %v499 = vpop.f32.mrb[0].mxu0
      %500 = vmatprep.mubr.f32.mxu0 0.0
      %v501 = vand.u32 %v273, 4294901760
      %v502 = vsub.f32 %v273, %v501
      %v503 = vand.u32 %v502, 4294901760
      %v504 = vsub.f32 %v502, %v503
      %v505 = vand.u32 %v504, 4294901760
      %506 = vmatmul.mubr.f32.gmra.mrb[0].mxu0 %v505
      %v507 = vpop.f32.mrb[0].mxu0
      %v508 = vadd.f32 %v224, %v507
      %v509 = vpop.f32.mrb[0].mxu0
      %510 = vmatprep.mubr.f32.mxu0 0.0
      %v511 = vand.u32 %v276, 4294901760
      %v512 = vsub.f32 %v276, %v511
      %v513 = vand.u32 %v512, 4294901760
      %v514 = vsub.f32 %v512, %v513
      %v515 = vand.u32 %v514, 4294901760
      %516 = vmatmul.mubr.f32.gmra.mrb[0].mxu0 %v515
      %v517 = vpop.f32.mrb[0].mxu0
      %v518 = vadd.f32 %v224, %v517
      %v519 = vpop.f32.mrb[0].mxu0
      %520 = vmatprep.mubr.f32.mxu0 0.0
      %v521 = vand.u32 %v279, 4294901760
      %v522 = vsub.f32 %v279, %v521
      %v523 = vand.u32 %v522, 4294901760
      %v524 = vsub.f32 %v522, %v523
      %v525 = vand.u32 %v524, 4294901760
      %526 = vmatmul.mubr.f32.gmra.mrb[0].mxu0 %v525
      %v527 = vpop.f32.mrb[0].mxu0
      %v528 = vadd.f32 %v224, %v527
      %v529 = vpop.f32.mrb[0].mxu0
      %530 = vdwg.mxu0
      %531 = vmatprep.subr.mxu0 0.0
      %v532 = vand.u32 %v214, 4294901760
      %v533 = vsub.f32 %v214, %v532
      %v534 = vand.u32 %v533, 4294901760
      %v535 = vsub.f32 %v533, %v534
      %v536 = vand.u32 %v535, 4294901760
      %537 = vmatpush1.msra.mxu0 %v536
      %538 = vmatprep.subr.mxu0 0.0
      %v539 = vand.u32 %v215, 4294901760
      %v540 = vsub.f32 %v215, %v539
      %v541 = vand.u32 %v540, 4294901760
      %v542 = vsub.f32 %v540, %v541
      %v543 = vand.u32 %v542, 4294901760
      %544 = vmatpush1.msra.mxu0 %v543
      %545 = vmatprep.subr.mxu0 0.0
      %v546 = vand.u32 %v216, 4294901760
      %v547 = vsub.f32 %v216, %v546
      %v548 = vand.u32 %v547, 4294901760
      %v549 = vsub.f32 %v547, %v548
      %v550 = vand.u32 %v549, 4294901760
      %551 = vmatpush1.msra.mxu0 %v550
      %552 = vmatprep.subr.mxu0 0.0
      %v553 = vand.u32 %v217, 4294901760
      %v554 = vsub.f32 %v217, %v553
      %v555 = vand.u32 %v554, 4294901760
      %v556 = vsub.f32 %v554, %v555
      %v557 = vand.u32 %v556, 4294901760
      %558 = vmatpush1.msra.mxu0 %v557
      %559 = vmatprep.subr.mxu0 0.0
      %v560 = vand.u32 %v218, 4294901760
      %v561 = vsub.f32 %v218, %v560
      %v562 = vand.u32 %v561, 4294901760
      %v563 = vsub.f32 %v561, %v562
      %v564 = vand.u32 %v563, 4294901760
      %565 = vmatpush1.msra.mxu0 %v564
      %566 = vmatprep.subr.mxu0 0.0
      %567 = vmatpush1.msra.mxu0 0.0
      %568 = vmatprep.subr.mxu0 0.0
      %569 = vmatpush1.msra.mxu0 0.0
      %570 = vmatprep.subr.mxu0 0.0
      %571 = vmatpush1.msra.mxu0 0.0
      %572 = vmatprep.subr.mxu0 0.0
      %573 = vmatpush1.msra.mxu0 0.0
      %574 = vmatprep.subr.mxu0 0.0
      %575 = vmatpush1.msra.mxu0 0.0
      %576 = vmatprep.subr.mxu0 0.0
      %577 = vmatpush1.msra.mxu0 0.0
      %578 = vmatprep.subr.mxu0 0.0
      %579 = vmatpush1.msra.mxu0 0.0
      %580 = vmatprep.subr.mxu0 0.0
      %581 = vmatpush1.msra.mxu0 0.0
      %582 = vmatprep.subr.mxu0 0.0
      %583 = vmatpush1.msra.mxu0 0.0
      %584 = vmatprep.subr.mxu0 0.0
      %585 = vmatpush1.msra.mxu0 0.0
      %586 = vmatprep.subr.mxu0 0.0
      %587 = vmatpush1.msra.mxu0 0.0
      %588 = vmatprep.subr.mxu0 0.0
      %589 = vmatpush1.msra.mxu0 0.0
      %590 = vmatprep.subr.mxu0 0.0
      %591 = vmatpush1.msra.mxu0 0.0
      %592 = vmatprep.subr.mxu0 0.0
      %593 = vmatpush1.msra.mxu0 0.0
      %594 = vmatprep.subr.mxu0 0.0
      %595 = vmatpush1.msra.mxu0 0.0
      %596 = vmatprep.subr.mxu0 0.0
      %597 = vmatpush1.msra.mxu0 0.0
      %598 = vmatprep.subr.mxu0 0.0
      %599 = vmatpush1.msra.mxu0 0.0
      %600 = vmatprep.subr.mxu0 0.0
      %601 = vmatpush1.msra.mxu0 0.0
      %602 = vmatprep.subr.mxu0 0.0
      %603 = vmatpush1.msra.mxu0 0.0
      %604 = vmatprep.subr.mxu0 0.0
      %605 = vmatpush1.msra.mxu0 0.0
      %606 = vmatprep.subr.mxu0 0.0
      %607 = vmatpush1.msra.mxu0 0.0
      %608 = vmatprep.subr.mxu0 0.0
      %609 = vmatpush1.msra.mxu0 0.0
      %610 = vmatprep.subr.mxu0 0.0
      %611 = vmatpush1.msra.mxu0 0.0
      %612 = vmatprep.subr.mxu0 0.0
      %613 = vmatpush1.msra.mxu0 0.0
      %614 = vmatprep.subr.mxu0 0.0
      %615 = vmatpush1.msra.mxu0 0.0
      %616 = vmatprep.subr.mxu0 0.0
      %617 = vmatpush1.msra.mxu0 0.0
      %618 = vmatprep.subr.mxu0 0.0
      %619 = vmatpush1.msra.mxu0 0.0
      %620 = vmatprep.mubr.f32.mxu0 0.0
      %v621 = vand.u32 %v228, 4294901760
      %622 = vmatmul.mubr.f32.gmra.mrb[0].mxu0 %v621
      %v623 = vpop.f32.mrb[0].mxu0
      %v624 = vadd.f32 %v358, %v623
      %v625 = vpop.f32.mrb[0].mxu0
      %626 = vmatprep.mubr.f32.mxu0 0.0
      %v627 = vand.u32 %v231, 4294901760
      %628 = vmatmul.mubr.f32.gmra.mrb[0].mxu0 %v627
      %v629 = vpop.f32.mrb[0].mxu0
      %v630 = vadd.f32 %v368, %v629
      %v631 = vpop.f32.mrb[0].mxu0
      %632 = vmatprep.mubr.f32.mxu0 0.0
      %v633 = vand.u32 %v234, 4294901760
      %634 = vmatmul.mubr.f32.gmra.mrb[0].mxu0 %v633
      %v635 = vpop.f32.mrb[0].mxu0
      %v636 = vadd.f32 %v378, %v635
      %v637 = vpop.f32.mrb[0].mxu0
      %638 = vmatprep.mubr.f32.mxu0 0.0
      %v639 = vand.u32 %v237, 4294901760
      %640 = vmatmul.mubr.f32.gmra.mrb[0].mxu0 %v639
      %v641 = vpop.f32.mrb[0].mxu0
      %v642 = vadd.f32 %v388, %v641
      %v643 = vpop.f32.mrb[0].mxu0
      %644 = vmatprep.mubr.f32.mxu0 0.0
      %v645 = vand.u32 %v240, 4294901760
      %646 = vmatmul.mubr.f32.gmra.mrb[0].mxu0 %v645
      %v647 = vpop.f32.mrb[0].mxu0
      %v648 = vadd.f32 %v398, %v647
      %v649 = vpop.f32.mrb[0].mxu0
      %650 = vmatprep.mubr.f32.mxu0 0.0
      %v651 = vand.u32 %v243, 4294901760
      %652 = vmatmul.mubr.f32.gmra.mrb[0].mxu0 %v651
      %v653 = vpop.f32.mrb[0].mxu0
      %v654 = vadd.f32 %v408, %v653
      %v655 = vpop.f32.mrb[0].mxu0
      %656 = vmatprep.mubr.f32.mxu0 0.0
      %v657 = vand.u32 %v246, 4294901760
      %658 = vmatmul.mubr.f32.gmra.mrb[0].mxu0 %v657
      %v659 = vpop.f32.mrb[0].mxu0
      %v660 = vadd.f32 %v418, %v659
      %v661 = vpop.f32.mrb[0].mxu0
      %662 = vmatprep.mubr.f32.mxu0 0.0
      %v663 = vand.u32 %v249, 4294901760
      %664 = vmatmul.mubr.f32.gmra.mrb[0].mxu0 %v663
      %v665 = vpop.f32.mrb[0].mxu0
      %v666 = vadd.f32 %v428, %v665
      %v667 = vpop.f32.mrb[0].mxu0
      %668 = vmatprep.mubr.f32.mxu0 0.0
      %v669 = vand.u32 %v252, 4294901760
      %670 = vmatmul.mubr.f32.gmra.mrb[0].mxu0 %v669
      %v671 = vpop.f32.mrb[0].mxu0
      %v672 = vadd.f32 %v438, %v671
      %v673 = vpop.f32.mrb[0].mxu0
      %674 = vmatprep.mubr.f32.mxu0 0.0
      %v675 = vand.u32 %v255, 4294901760
      %676 = vmatmul.mubr.f32.gmra.mrb[0].mxu0 %v675
      %v677 = vpop.f32.mrb[0].mxu0
      %v678 = vadd.f32 %v448, %v677
      %v679 = vpop.f32.mrb[0].mxu0
      %680 = vmatprep.mubr.f32.mxu0 0.0
      %v681 = vand.u32 %v258, 4294901760
      %682 = vmatmul.mubr.f32.gmra.mrb[0].mxu0 %v681
      %v683 = vpop.f32.mrb[0].mxu0
      %v684 = vadd.f32 %v458, %v683
      %v685 = vpop.f32.mrb[0].mxu0
      %686 = vmatprep.mubr.f32.mxu0 0.0
      %v687 = vand.u32 %v261, 4294901760
      %688 = vmatmul.mubr.f32.gmra.mrb[0].mxu0 %v687
      %v689 = vpop.f32.mrb[0].mxu0
      %v690 = vadd.f32 %v468, %v689
      %v691 = vpop.f32.mrb[0].mxu0
      %692 = vmatprep.mubr.f32.mxu0 0.0
      %v693 = vand.u32 %v264, 4294901760
      %694 = vmatmul.mubr.f32.gmra.mrb[0].mxu0 %v693
      %v695 = vpop.f32.mrb[0].mxu0
      %v696 = vadd.f32 %v478, %v695
      %v697 = vpop.f32.mrb[0].mxu0
      %698 = vmatprep.mubr.f32.mxu0 0.0
      %v699 = vand.u32 %v267, 4294901760
      %700 = vmatmul.mubr.f32.gmra.mrb[0].mxu0 %v699
      %v701 = vpop.f32.mrb[0].mxu0
      %v702 = vadd.f32 %v488, %v701
      %v703 = vpop.f32.mrb[0].mxu0
      %704 = vmatprep.mubr.f32.mxu0 0.0
      %v705 = vand.u32 %v270, 4294901760
      %706 = vmatmul.mubr.f32.gmra.mrb[0].mxu0 %v705
      %v707 = vpop.f32.mrb[0].mxu0
      %v708 = vadd.f32 %v498, %v707
      %v709 = vpop.f32.mrb[0].mxu0
      %710 = vmatprep.mubr.f32.mxu0 0.0
      %v711 = vand.u32 %v273, 4294901760
      %712 = vmatmul.mubr.f32.gmra.mrb[0].mxu0 %v711
      %v713 = vpop.f32.mrb[0].mxu0
      %v714 = vadd.f32 %v508, %v713
      %v715 = vpop.f32.mrb[0].mxu0
      %716 = vmatprep.mubr.f32.mxu0 0.0
      %v717 = vand.u32 %v276, 4294901760
      %718 = vmatmul.mubr.f32.gmra.mrb[0].mxu0 %v717
      %v719 = vpop.f32.mrb[0].mxu0
      %v720 = vadd.f32 %v518, %v719
      %v721 = vpop.f32.mrb[0].mxu0
      %722 = vmatprep.mubr.f32.mxu0 0.0
      %v723 = vand.u32 %v279, 4294901760
      %724 = vmatmul.mubr.f32.gmra.mrb[0].mxu0 %v723
      %v725 = vpop.f32.mrb[0].mxu0
      %v726 = vadd.f32 %v528, %v725
      %v727 = vpop.f32.mrb[0].mxu0
      %728 = vdwg.mxu0
      %729 = vmatprep.subr.mxu0 0.0
      %v730 = vand.u32 %v214, 4294901760
      %v731 = vsub.f32 %v214, %v730
      %732 = vmatpush1.msra.mxu0 %v731
      %733 = vmatprep.subr.mxu0 0.0
      %v734 = vand.u32 %v215, 4294901760
      %v735 = vsub.f32 %v215, %v734
      %736 = vmatpush1.msra.mxu0 %v735
      %737 = vmatprep.subr.mxu0 0.0
      %v738 = vand.u32 %v216, 4294901760
      %v739 = vsub.f32 %v216, %v738
      %740 = vmatpush1.msra.mxu0 %v739
      %741 = vmatprep.subr.mxu0 0.0
      %v742 = vand.u32 %v217, 4294901760
      %v743 = vsub.f32 %v217, %v742
      %744 = vmatpush1.msra.mxu0 %v743
      %745 = vmatprep.subr.mxu0 0.0
      %v746 = vand.u32 %v218, 4294901760
      %v747 = vsub.f32 %v218, %v746
      %748 = vmatpush1.msra.mxu0 %v747
      %749 = vmatprep.subr.mxu0 0.0
      %750 = vmatpush1.msra.mxu0 0.0
      %751 = vmatprep.subr.mxu0 0.0
      %752 = vmatpush1.msra.mxu0 0.0
      %753 = vmatprep.subr.mxu0 0.0
      %754 = vmatpush1.msra.mxu0 0.0
      %755 = vmatprep.subr.mxu0 0.0
      %756 = vmatpush1.msra.mxu0 0.0
      %757 = vmatprep.subr.mxu0 0.0
      %758 = vmatpush1.msra.mxu0 0.0
      %759 = vmatprep.subr.mxu0 0.0
      %760 = vmatpush1.msra.mxu0 0.0
      %761 = vmatprep.subr.mxu0 0.0
      %762 = vmatpush1.msra.mxu0 0.0
      %763 = vmatprep.subr.mxu0 0.0
      %764 = vmatpush1.msra.mxu0 0.0
      %765 = vmatprep.subr.mxu0 0.0
      %766 = vmatpush1.msra.mxu0 0.0
      %767 = vmatprep.subr.mxu0 0.0
      %768 = vmatpush1.msra.mxu0 0.0
      %769 = vmatprep.subr.mxu0 0.0
      %770 = vmatpush1.msra.mxu0 0.0
      %771 = vmatprep.subr.mxu0 0.0
      %772 = vmatpush1.msra.mxu0 0.0
      %773 = vmatprep.subr.mxu0 0.0
      %774 = vmatpush1.msra.mxu0 0.0
      %775 = vmatprep.subr.mxu0 0.0
      %776 = vmatpush1.msra.mxu0 0.0
      %777 = vmatprep.subr.mxu0 0.0
      %778 = vmatpush1.msra.mxu0 0.0
      %779 = vmatprep.subr.mxu0 0.0
      %780 = vmatpush1.msra.mxu0 0.0
      %781 = vmatprep.subr.mxu0 0.0
      %782 = vmatpush1.msra.mxu0 0.0
      %783 = vmatprep.subr.mxu0 0.0
      %784 = vmatpush1.msra.mxu0 0.0
      %785 = vmatprep.subr.mxu0 0.0
      %786 = vmatpush1.msra.mxu0 0.0
      %787 = vmatprep.subr.mxu0 0.0
      %788 = vmatpush1.msra.mxu0 0.0
      %789 = vmatprep.subr.mxu0 0.0
      %790 = vmatpush1.msra.mxu0 0.0
      %791 = vmatprep.subr.mxu0 0.0
      %792 = vmatpush1.msra.mxu0 0.0
      %793 = vmatprep.subr.mxu0 0.0
      %794 = vmatpush1.msra.mxu0 0.0
      %795 = vmatprep.subr.mxu0 0.0
      %796 = vmatpush1.msra.mxu0 0.0
      %797 = vmatprep.subr.mxu0 0.0
      %798 = vmatpush1.msra.mxu0 0.0
      %799 = vmatprep.subr.mxu0 0.0
      %800 = vmatpush1.msra.mxu0 0.0
      %801 = vmatprep.subr.mxu0 0.0
      %802 = vmatpush1.msra.mxu0 0.0
      %803 = vmatprep.mubr.f32.mxu0 0.0
      %v804 = vand.u32 %v228, 4294901760
      %v805 = vsub.f32 %v228, %v804
      %806 = vmatmul.mubr.f32.gmra.mrb[0].mxu0 %v805
      %v807 = vpop.f32.mrb[0].mxu0
      %v808 = vadd.f32 %v624, %v807
      %v809 = vpop.f32.mrb[0].mxu0
      %810 = vmatprep.mubr.f32.mxu0 0.0
      %v811 = vand.u32 %v231, 4294901760
      %v812 = vsub.f32 %v231, %v811
      %813 = vmatmul.mubr.f32.gmra.mrb[0].mxu0 %v812
      %v814 = vpop.f32.mrb[0].mxu0
      %v815 = vadd.f32 %v630, %v814
      %v816 = vpop.f32.mrb[0].mxu0
      %817 = vmatprep.mubr.f32.mxu0 0.0
      %v818 = vand.u32 %v234, 4294901760
      %v819 = vsub.f32 %v234, %v818
      %820 = vmatmul.mubr.f32.gmra.mrb[0].mxu0 %v819
      %v821 = vpop.f32.mrb[0].mxu0
      %v822 = vadd.f32 %v636, %v821
      %v823 = vpop.f32.mrb[0].mxu0
      %824 = vmatprep.mubr.f32.mxu0 0.0
      %v825 = vand.u32 %v237, 4294901760
      %v826 = vsub.f32 %v237, %v825
      %827 = vmatmul.mubr.f32.gmra.mrb[0].mxu0 %v826
      %v828 = vpop.f32.mrb[0].mxu0
      %v829 = vadd.f32 %v642, %v828
      %v830 = vpop.f32.mrb[0].mxu0
      %831 = vmatprep.mubr.f32.mxu0 0.0
      %v832 = vand.u32 %v240, 4294901760
      %v833 = vsub.f32 %v240, %v832
      %834 = vmatmul.mubr.f32.gmra.mrb[0].mxu0 %v833
      %v835 = vpop.f32.mrb[0].mxu0
      %v836 = vadd.f32 %v648, %v835
      %v837 = vpop.f32.mrb[0].mxu0
      %838 = vmatprep.mubr.f32.mxu0 0.0
      %v839 = vand.u32 %v243, 4294901760
      %v840 = vsub.f32 %v243, %v839
      %841 = vmatmul.mubr.f32.gmra.mrb[0].mxu0 %v840
      %v842 = vpop.f32.mrb[0].mxu0
      %v843 = vadd.f32 %v654, %v842
      %v844 = vpop.f32.mrb[0].mxu0
      %845 = vmatprep.mubr.f32.mxu0 0.0
      %v846 = vand.u32 %v246, 4294901760
      %v847 = vsub.f32 %v246, %v846
      %848 = vmatmul.mubr.f32.gmra.mrb[0].mxu0 %v847
      %v849 = vpop.f32.mrb[0].mxu0
      %v850 = vadd.f32 %v660, %v849
      %v851 = vpop.f32.mrb[0].mxu0
      %852 = vmatprep.mubr.f32.mxu0 0.0
      %v853 = vand.u32 %v249, 4294901760
      %v854 = vsub.f32 %v249, %v853
      %855 = vmatmul.mubr.f32.gmra.mrb[0].mxu0 %v854
      %v856 = vpop.f32.mrb[0].mxu0
      %v857 = vadd.f32 %v666, %v856
      %v858 = vpop.f32.mrb[0].mxu0
      %859 = vmatprep.mubr.f32.mxu0 0.0
      %v860 = vand.u32 %v252, 4294901760
      %v861 = vsub.f32 %v252, %v860
      %862 = vmatmul.mubr.f32.gmra.mrb[0].mxu0 %v861
      %v863 = vpop.f32.mrb[0].mxu0
      %v864 = vadd.f32 %v672, %v863
      %v865 = vpop.f32.mrb[0].mxu0
      %866 = vmatprep.mubr.f32.mxu0 0.0
      %v867 = vand.u32 %v255, 4294901760
      %v868 = vsub.f32 %v255, %v867
      %869 = vmatmul.mubr.f32.gmra.mrb[0].mxu0 %v868
      %v870 = vpop.f32.mrb[0].mxu0
      %v871 = vadd.f32 %v678, %v870
      %v872 = vpop.f32.mrb[0].mxu0
      %873 = vmatprep.mubr.f32.mxu0 0.0
      %v874 = vand.u32 %v258, 4294901760
      %v875 = vsub.f32 %v258, %v874
      %876 = vmatmul.mubr.f32.gmra.mrb[0].mxu0 %v875
      %v877 = vpop.f32.mrb[0].mxu0
      %v878 = vadd.f32 %v684, %v877
      %v879 = vpop.f32.mrb[0].mxu0
      %880 = vmatprep.mubr.f32.mxu0 0.0
      %v881 = vand.u32 %v261, 4294901760
      %v882 = vsub.f32 %v261, %v881
      %883 = vmatmul.mubr.f32.gmra.mrb[0].mxu0 %v882
      %v884 = vpop.f32.mrb[0].mxu0
      %v885 = vadd.f32 %v690, %v884
      %v886 = vpop.f32.mrb[0].mxu0
      %887 = vmatprep.mubr.f32.mxu0 0.0
      %v888 = vand.u32 %v264, 4294901760
      %v889 = vsub.f32 %v264, %v888
      %890 = vmatmul.mubr.f32.gmra.mrb[0].mxu0 %v889
      %v891 = vpop.f32.mrb[0].mxu0
      %v892 = vadd.f32 %v696, %v891
      %v893 = vpop.f32.mrb[0].mxu0
      %894 = vmatprep.mubr.f32.mxu0 0.0
      %v895 = vand.u32 %v267, 4294901760
      %v896 = vsub.f32 %v267, %v895
      %897 = vmatmul.mubr.f32.gmra.mrb[0].mxu0 %v896
      %v898 = vpop.f32.mrb[0].mxu0
      %v899 = vadd.f32 %v702, %v898
      %v900 = vpop.f32.mrb[0].mxu0
      %901 = vmatprep.mubr.f32.mxu0 0.0
      %v902 = vand.u32 %v270, 4294901760
      %v903 = vsub.f32 %v270, %v902
      %904 = vmatmul.mubr.f32.gmra.mrb[0].mxu0 %v903
      %v905 = vpop.f32.mrb[0].mxu0
      %v906 = vadd.f32 %v708, %v905
      %v907 = vpop.f32.mrb[0].mxu0
      %908 = vmatprep.mubr.f32.mxu0 0.0
      %v909 = vand.u32 %v273, 4294901760
      %v910 = vsub.f32 %v273, %v909
      %911 = vmatmul.mubr.f32.gmra.mrb[0].mxu0 %v910
      %v912 = vpop.f32.mrb[0].mxu0
      %v913 = vadd.f32 %v714, %v912
      %v914 = vpop.f32.mrb[0].mxu0
      %915 = vmatprep.mubr.f32.mxu0 0.0
      %v916 = vand.u32 %v276, 4294901760
      %v917 = vsub.f32 %v276, %v916
      %918 = vmatmul.mubr.f32.gmra.mrb[0].mxu0 %v917
      %v919 = vpop.f32.mrb[0].mxu0
      %v920 = vadd.f32 %v720, %v919
      %v921 = vpop.f32.mrb[0].mxu0
      %922 = vmatprep.mubr.f32.mxu0 0.0
      %v923 = vand.u32 %v279, 4294901760
      %v924 = vsub.f32 %v279, %v923
      %925 = vmatmul.mubr.f32.gmra.mrb[0].mxu0 %v924
      %v926 = vpop.f32.mrb[0].mxu0
      %v927 = vadd.f32 %v726, %v926
      %v928 = vpop.f32.mrb[0].mxu0
      %929 = vdwg.mxu0
      %930 = vmatprep.subr.mxu0 0.0
      %v931 = vand.u32 %v214, 4294901760
      %932 = vmatpush1.msra.mxu0 %v931
      %933 = vmatprep.subr.mxu0 0.0
      %v934 = vand.u32 %v215, 4294901760
      %935 = vmatpush1.msra.mxu0 %v934
      %936 = vmatprep.subr.mxu0 0.0
      %v937 = vand.u32 %v216, 4294901760
      %938 = vmatpush1.msra.mxu0 %v937
      %939 = vmatprep.subr.mxu0 0.0
      %v940 = vand.u32 %v217, 4294901760
      %941 = vmatpush1.msra.mxu0 %v940
      %942 = vmatprep.subr.mxu0 0.0
      %v943 = vand.u32 %v218, 4294901760
      %944 = vmatpush1.msra.mxu0 %v943
      %945 = vmatprep.subr.mxu0 0.0
      %946 = vmatpush1.msra.mxu0 0.0
      %947 = vmatprep.subr.mxu0 0.0
      %948 = vmatpush1.msra.mxu0 0.0
      %949 = vmatprep.subr.mxu0 0.0
      %950 = vmatpush1.msra.mxu0 0.0
      %951 = vmatprep.subr.mxu0 0.0
      %952 = vmatpush1.msra.mxu0 0.0
      %953 = vmatprep.subr.mxu0 0.0
      %954 = vmatpush1.msra.mxu0 0.0
      %955 = vmatprep.subr.mxu0 0.0
      %956 = vmatpush1.msra.mxu0 0.0
      %957 = vmatprep.subr.mxu0 0.0
      %958 = vmatpush1.msra.mxu0 0.0
      %959 = vmatprep.subr.mxu0 0.0
      %960 = vmatpush1.msra.mxu0 0.0
      %961 = vmatprep.subr.mxu0 0.0
      %962 = vmatpush1.msra.mxu0 0.0
      %963 = vmatprep.subr.mxu0 0.0
      %964 = vmatpush1.msra.mxu0 0.0
      %965 = vmatprep.subr.mxu0 0.0
      %966 = vmatpush1.msra.mxu0 0.0
      %967 = vmatprep.subr.mxu0 0.0
      %968 = vmatpush1.msra.mxu0 0.0
      %969 = vmatprep.subr.mxu0 0.0
      %970 = vmatpush1.msra.mxu0 0.0
      %971 = vmatprep.subr.mxu0 0.0
      %972 = vmatpush1.msra.mxu0 0.0
      %973 = vmatprep.subr.mxu0 0.0
      %974 = vmatpush1.msra.mxu0 0.0
      %975 = vmatprep.subr.mxu0 0.0
      %976 = vmatpush1.msra.mxu0 0.0
      %977 = vmatprep.subr.mxu0 0.0
      %978 = vmatpush1.msra.mxu0 0.0
      %979 = vmatprep.subr.mxu0 0.0
      %980 = vmatpush1.msra.mxu0 0.0
      %981 = vmatprep.subr.mxu0 0.0
      %982 = vmatpush1.msra.mxu0 0.0
      %983 = vmatprep.subr.mxu0 0.0
      %984 = vmatpush1.msra.mxu0 0.0
      %985 = vmatprep.subr.mxu0 0.0
      %986 = vmatpush1.msra.mxu0 0.0
      %987 = vmatprep.subr.mxu0 0.0
      %988 = vmatpush1.msra.mxu0 0.0
      %989 = vmatprep.subr.mxu0 0.0
      %990 = vmatpush1.msra.mxu0 0.0
      %991 = vmatprep.subr.mxu0 0.0
      %992 = vmatpush1.msra.mxu0 0.0
      %993 = vmatprep.subr.mxu0 0.0
      %994 = vmatpush1.msra.mxu0 0.0
      %995 = vmatprep.subr.mxu0 0.0
      %996 = vmatpush1.msra.mxu0 0.0
      %997 = vmatprep.subr.mxu0 0.0
      %998 = vmatpush1.msra.mxu0 0.0
      %999 = vmatprep.mubr.f32.mxu0 0.0
      %v1000 = vand.u32 %v228, 4294901760
      %v1001 = vsub.f32 %v228, %v1000
      %v1002 = vand.u32 %v1001, 4294901760
      %1003 = vmatmul.mubr.f32.gmra.mrb[0].mxu0 %v1002
      %v1004 = vpop.f32.mrb[0].mxu0
      %v1005 = vadd.f32 %v808, %v1004
      %v1006 = vpop.f32.mrb[0].mxu0
      %1007 = vmatprep.mubr.f32.mxu0 0.0
      %v1008 = vand.u32 %v231, 4294901760
      %v1009 = vsub.f32 %v231, %v1008
      %v1010 = vand.u32 %v1009, 4294901760
      %1011 = vmatmul.mubr.f32.gmra.mrb[0].mxu0 %v1010
      %v1012 = vpop.f32.mrb[0].mxu0
      %v1013 = vadd.f32 %v815, %v1012
      %v1014 = vpop.f32.mrb[0].mxu0
      %1015 = vmatprep.mubr.f32.mxu0 0.0
      %v1016 = vand.u32 %v234, 4294901760
      %v1017 = vsub.f32 %v234, %v1016
      %v1018 = vand.u32 %v1017, 4294901760
      %1019 = vmatmul.mubr.f32.gmra.mrb[0].mxu0 %v1018
      %v1020 = vpop.f32.mrb[0].mxu0
      %v1021 = vadd.f32 %v822, %v1020
      %v1022 = vpop.f32.mrb[0].mxu0
      %1023 = vmatprep.mubr.f32.mxu0 0.0
      %v1024 = vand.u32 %v237, 4294901760
      %v1025 = vsub.f32 %v237, %v1024
      %v1026 = vand.u32 %v1025, 4294901760
      %1027 = vmatmul.mubr.f32.gmra.mrb[0].mxu0 %v1026
      %v1028 = vpop.f32.mrb[0].mxu0
      %v1029 = vadd.f32 %v829, %v1028
      %v1030 = vpop.f32.mrb[0].mxu0
      %1031 = vmatprep.mubr.f32.mxu0 0.0
      %v1032 = vand.u32 %v240, 4294901760
      %v1033 = vsub.f32 %v240, %v1032
      %v1034 = vand.u32 %v1033, 4294901760
      %1035 = vmatmul.mubr.f32.gmra.mrb[0].mxu0 %v1034
      %v1036 = vpop.f32.mrb[0].mxu0
      %v1037 = vadd.f32 %v836, %v1036
      %v1038 = vpop.f32.mrb[0].mxu0
      %1039 = vmatprep.mubr.f32.mxu0 0.0
      %v1040 = vand.u32 %v243, 4294901760
      %v1041 = vsub.f32 %v243, %v1040
      %v1042 = vand.u32 %v1041, 4294901760
      %1043 = vmatmul.mubr.f32.gmra.mrb[0].mxu0 %v1042
      %v1044 = vpop.f32.mrb[0].mxu0
      %v1045 = vadd.f32 %v843, %v1044
      %v1046 = vpop.f32.mrb[0].mxu0
      %1047 = vmatprep.mubr.f32.mxu0 0.0
      %v1048 = vand.u32 %v246, 4294901760
      %v1049 = vsub.f32 %v246, %v1048
      %v1050 = vand.u32 %v1049, 4294901760
      %1051 = vmatmul.mubr.f32.gmra.mrb[0].mxu0 %v1050
      %v1052 = vpop.f32.mrb[0].mxu0
      %v1053 = vadd.f32 %v850, %v1052
      %v1054 = vpop.f32.mrb[0].mxu0
      %1055 = vmatprep.mubr.f32.mxu0 0.0
      %v1056 = vand.u32 %v249, 4294901760
      %v1057 = vsub.f32 %v249, %v1056
      %v1058 = vand.u32 %v1057, 4294901760
      %1059 = vmatmul.mubr.f32.gmra.mrb[0].mxu0 %v1058
      %v1060 = vpop.f32.mrb[0].mxu0
      %v1061 = vadd.f32 %v857, %v1060
      %v1062 = vpop.f32.mrb[0].mxu0
      %1063 = vmatprep.mubr.f32.mxu0 0.0
      %v1064 = vand.u32 %v252, 4294901760
      %v1065 = vsub.f32 %v252, %v1064
      %v1066 = vand.u32 %v1065, 4294901760
      %1067 = vmatmul.mubr.f32.gmra.mrb[0].mxu0 %v1066
      %v1068 = vpop.f32.mrb[0].mxu0
      %v1069 = vadd.f32 %v864, %v1068
      %v1070 = vpop.f32.mrb[0].mxu0
      %1071 = vmatprep.mubr.f32.mxu0 0.0
      %v1072 = vand.u32 %v255, 4294901760
      %v1073 = vsub.f32 %v255, %v1072
      %v1074 = vand.u32 %v1073, 4294901760
      %1075 = vmatmul.mubr.f32.gmra.mrb[0].mxu0 %v1074
      %v1076 = vpop.f32.mrb[0].mxu0
      %v1077 = vadd.f32 %v871, %v1076
      %v1078 = vpop.f32.mrb[0].mxu0
      %1079 = vmatprep.mubr.f32.mxu0 0.0
      %v1080 = vand.u32 %v258, 4294901760
      %v1081 = vsub.f32 %v258, %v1080
      %v1082 = vand.u32 %v1081, 4294901760
      %1083 = vmatmul.mubr.f32.gmra.mrb[0].mxu0 %v1082
      %v1084 = vpop.f32.mrb[0].mxu0
      %v1085 = vadd.f32 %v878, %v1084
      %v1086 = vpop.f32.mrb[0].mxu0
      %1087 = vmatprep.mubr.f32.mxu0 0.0
      %v1088 = vand.u32 %v261, 4294901760
      %v1089 = vsub.f32 %v261, %v1088
      %v1090 = vand.u32 %v1089, 4294901760
      %1091 = vmatmul.mubr.f32.gmra.mrb[0].mxu0 %v1090
      %v1092 = vpop.f32.mrb[0].mxu0
      %v1093 = vadd.f32 %v885, %v1092
      %v1094 = vpop.f32.mrb[0].mxu0
      %1095 = vmatprep.mubr.f32.mxu0 0.0
      %v1096 = vand.u32 %v264, 4294901760
      %v1097 = vsub.f32 %v264, %v1096
      %v1098 = vand.u32 %v1097, 4294901760
      %1099 = vmatmul.mubr.f32.gmra.mrb[0].mxu0 %v1098
      %v1100 = vpop.f32.mrb[0].mxu0
      %v1101 = vadd.f32 %v892, %v1100
      %v1102 = vpop.f32.mrb[0].mxu0
      %1103 = vmatprep.mubr.f32.mxu0 0.0
      %v1104 = vand.u32 %v267, 4294901760
      %v1105 = vsub.f32 %v267, %v1104
      %v1106 = vand.u32 %v1105, 4294901760
      %1107 = vmatmul.mubr.f32.gmra.mrb[0].mxu0 %v1106
      %v1108 = vpop.f32.mrb[0].mxu0
      %v1109 = vadd.f32 %v899, %v1108
      %v1110 = vpop.f32.mrb[0].mxu0
      %1111 = vmatprep.mubr.f32.mxu0 0.0
      %v1112 = vand.u32 %v270, 4294901760
      %v1113 = vsub.f32 %v270, %v1112
      %v1114 = vand.u32 %v1113, 4294901760
      %1115 = vmatmul.mubr.f32.gmra.mrb[0].mxu0 %v1114
      %v1116 = vpop.f32.mrb[0].mxu0
      %v1117 = vadd.f32 %v906, %v1116
      %v1118 = vpop.f32.mrb[0].mxu0
      %1119 = vmatprep.mubr.f32.mxu0 0.0
      %v1120 = vand.u32 %v273, 4294901760
      %v1121 = vsub.f32 %v273, %v1120
      %v1122 = vand.u32 %v1121, 4294901760
      %1123 = vmatmul.mubr.f32.gmra.mrb[0].mxu0 %v1122
      %v1124 = vpop.f32.mrb[0].mxu0
      %v1125 = vadd.f32 %v913, %v1124
      %v1126 = vpop.f32.mrb[0].mxu0
      %1127 = vmatprep.mubr.f32.mxu0 0.0
      %v1128 = vand.u32 %v276, 4294901760
      %v1129 = vsub.f32 %v276, %v1128
      %v1130 = vand.u32 %v1129, 4294901760
      %1131 = vmatmul.mubr.f32.gmra.mrb[0].mxu0 %v1130
      %v1132 = vpop.f32.mrb[0].mxu0
      %v1133 = vadd.f32 %v920, %v1132
      %v1134 = vpop.f32.mrb[0].mxu0
      %1135 = vmatprep.mubr.f32.mxu0 0.0
      %v1136 = vand.u32 %v279, 4294901760
      %v1137 = vsub.f32 %v279, %v1136
      %v1138 = vand.u32 %v1137, 4294901760
      %1139 = vmatmul.mubr.f32.gmra.mrb[0].mxu0 %v1138
      %v1140 = vpop.f32.mrb[0].mxu0
      %v1141 = vadd.f32 %v927, %v1140
      %v1142 = vpop.f32.mrb[0].mxu0
      %1143 = vdwg.mxu0
      %1144 = vmatprep.subr.mxu0 0.0
      %v1145 = vand.u32 %v214, 4294901760
      %v1146 = vsub.f32 %v214, %v1145
      %v1147 = vand.u32 %v1146, 4294901760
      %1148 = vmatpush1.msra.mxu0 %v1147
      %1149 = vmatprep.subr.mxu0 0.0
      %v1150 = vand.u32 %v215, 4294901760
      %v1151 = vsub.f32 %v215, %v1150
      %v1152 = vand.u32 %v1151, 4294901760
      %1153 = vmatpush1.msra.mxu0 %v1152
      %1154 = vmatprep.subr.mxu0 0.0
      %v1155 = vand.u32 %v216, 4294901760
      %v1156 = vsub.f32 %v216, %v1155
      %v1157 = vand.u32 %v1156, 4294901760
      %1158 = vmatpush1.msra.mxu0 %v1157
      %1159 = vmatprep.subr.mxu0 0.0
      %v1160 = vand.u32 %v217, 4294901760
      %v1161 = vsub.f32 %v217, %v1160
      %v1162 = vand.u32 %v1161, 4294901760
      %1163 = vmatpush1.msra.mxu0 %v1162
      %1164 = vmatprep.subr.mxu0 0.0
      %v1165 = vand.u32 %v218, 4294901760
      %v1166 = vsub.f32 %v218, %v1165
      %v1167 = vand.u32 %v1166, 4294901760
      %1168 = vmatpush1.msra.mxu0 %v1167
      %1169 = vmatprep.subr.mxu0 0.0
      %1170 = vmatpush1.msra.mxu0 0.0
      %1171 = vmatprep.subr.mxu0 0.0
      %1172 = vmatpush1.msra.mxu0 0.0
      %1173 = vmatprep.subr.mxu0 0.0
      %1174 = vmatpush1.msra.mxu0 0.0
      %1175 = vmatprep.subr.mxu0 0.0
      %1176 = vmatpush1.msra.mxu0 0.0
      %1177 = vmatprep.subr.mxu0 0.0
      %1178 = vmatpush1.msra.mxu0 0.0
      %1179 = vmatprep.subr.mxu0 0.0
      %1180 = vmatpush1.msra.mxu0 0.0
      %1181 = vmatprep.subr.mxu0 0.0
      %1182 = vmatpush1.msra.mxu0 0.0
      %1183 = vmatprep.subr.mxu0 0.0
      %1184 = vmatpush1.msra.mxu0 0.0
      %1185 = vmatprep.subr.mxu0 0.0
      %1186 = vmatpush1.msra.mxu0 0.0
      %1187 = vmatprep.subr.mxu0 0.0
      %1188 = vmatpush1.msra.mxu0 0.0
      %1189 = vmatprep.subr.mxu0 0.0
      %1190 = vmatpush1.msra.mxu0 0.0
      %1191 = vmatprep.subr.mxu0 0.0
      %1192 = vmatpush1.msra.mxu0 0.0
      %1193 = vmatprep.subr.mxu0 0.0
      %1194 = vmatpush1.msra.mxu0 0.0
      %1195 = vmatprep.subr.mxu0 0.0
      %1196 = vmatpush1.msra.mxu0 0.0
      %1197 = vmatprep.subr.mxu0 0.0
      %1198 = vmatpush1.msra.mxu0 0.0
      %1199 = vmatprep.subr.mxu0 0.0
      %1200 = vmatpush1.msra.mxu0 0.0
      %1201 = vmatprep.subr.mxu0 0.0
      %1202 = vmatpush1.msra.mxu0 0.0
      %1203 = vmatprep.subr.mxu0 0.0
      %1204 = vmatpush1.msra.mxu0 0.0
      %1205 = vmatprep.subr.mxu0 0.0
      %1206 = vmatpush1.msra.mxu0 0.0
      %1207 = vmatprep.subr.mxu0 0.0
      %1208 = vmatpush1.msra.mxu0 0.0
      %1209 = vmatprep.subr.mxu0 0.0
      %1210 = vmatpush1.msra.mxu0 0.0
      %1211 = vmatprep.subr.mxu0 0.0
      %1212 = vmatpush1.msra.mxu0 0.0
      %1213 = vmatprep.subr.mxu0 0.0
      %1214 = vmatpush1.msra.mxu0 0.0
      %1215 = vmatprep.subr.mxu0 0.0
      %1216 = vmatpush1.msra.mxu0 0.0
      %1217 = vmatprep.subr.mxu0 0.0
      %1218 = vmatpush1.msra.mxu0 0.0
      %1219 = vmatprep.subr.mxu0 0.0
      %1220 = vmatpush1.msra.mxu0 0.0
      %1221 = vmatprep.subr.mxu0 0.0
      %1222 = vmatpush1.msra.mxu0 0.0
      %1223 = vmatprep.mubr.f32.mxu0 0.0
      %v1224 = vand.u32 %v228, 4294901760
      %1225 = vmatmul.mubr.f32.gmra.mrb[0].mxu0 %v1224
      %v1226 = vpop.f32.mrb[0].mxu0
      %v1227 = vadd.f32 %v1005, %v1226
      %v1228 = vpop.f32.mrb[0].mxu0
      %1229 = vmatprep.mubr.f32.mxu0 0.0
      %v1230 = vand.u32 %v231, 4294901760
      %1231 = vmatmul.mubr.f32.gmra.mrb[0].mxu0 %v1230
      %v1232 = vpop.f32.mrb[0].mxu0
      %v1233 = vadd.f32 %v1013, %v1232
      %v1234 = vpop.f32.mrb[0].mxu0
      %1235 = vmatprep.mubr.f32.mxu0 0.0
      %v1236 = vand.u32 %v234, 4294901760
      %1237 = vmatmul.mubr.f32.gmra.mrb[0].mxu0 %v1236
      %v1238 = vpop.f32.mrb[0].mxu0
      %v1239 = vadd.f32 %v1021, %v1238
      %v1240 = vpop.f32.mrb[0].mxu0
      %1241 = vmatprep.mubr.f32.mxu0 0.0
      %v1242 = vand.u32 %v237, 4294901760
      %1243 = vmatmul.mubr.f32.gmra.mrb[0].mxu0 %v1242
      %v1244 = vpop.f32.mrb[0].mxu0
      %v1245 = vadd.f32 %v1029, %v1244
      %v1246 = vpop.f32.mrb[0].mxu0
      %1247 = vmatprep.mubr.f32.mxu0 0.0
      %v1248 = vand.u32 %v240, 4294901760
      %1249 = vmatmul.mubr.f32.gmra.mrb[0].mxu0 %v1248
      %v1250 = vpop.f32.mrb[0].mxu0
      %v1251 = vadd.f32 %v1037, %v1250
      %v1252 = vpop.f32.mrb[0].mxu0
      %1253 = vmatprep.mubr.f32.mxu0 0.0
      %v1254 = vand.u32 %v243, 4294901760
      %1255 = vmatmul.mubr.f32.gmra.mrb[0].mxu0 %v1254
      %v1256 = vpop.f32.mrb[0].mxu0
      %v1257 = vadd.f32 %v1045, %v1256
      %v1258 = vpop.f32.mrb[0].mxu0
      %1259 = vmatprep.mubr.f32.mxu0 0.0
      %v1260 = vand.u32 %v246, 4294901760
      %1261 = vmatmul.mubr.f32.gmra.mrb[0].mxu0 %v1260
      %v1262 = vpop.f32.mrb[0].mxu0
      %v1263 = vadd.f32 %v1053, %v1262
      %v1264 = vpop.f32.mrb[0].mxu0
      %1265 = vmatprep.mubr.f32.mxu0 0.0
      %v1266 = vand.u32 %v249, 4294901760
      %1267 = vmatmul.mubr.f32.gmra.mrb[0].mxu0 %v1266
      %v1268 = vpop.f32.mrb[0].mxu0
      %v1269 = vadd.f32 %v1061, %v1268
      %v1270 = vpop.f32.mrb[0].mxu0
      %1271 = vmatprep.mubr.f32.mxu0 0.0
      %v1272 = vand.u32 %v252, 4294901760
      %1273 = vmatmul.mubr.f32.gmra.mrb[0].mxu0 %v1272
      %v1274 = vpop.f32.mrb[0].mxu0
      %v1275 = vadd.f32 %v1069, %v1274
      %v1276 = vpop.f32.mrb[0].mxu0
      %1277 = vmatprep.mubr.f32.mxu0 0.0
      %v1278 = vand.u32 %v255, 4294901760
      %1279 = vmatmul.mubr.f32.gmra.mrb[0].mxu0 %v1278
      %v1280 = vpop.f32.mrb[0].mxu0
      %v1281 = vadd.f32 %v1077, %v1280
      %v1282 = vpop.f32.mrb[0].mxu0
      %1283 = vmatprep.mubr.f32.mxu0 0.0
      %v1284 = vand.u32 %v258, 4294901760
      %1285 = vmatmul.mubr.f32.gmra.mrb[0].mxu0 %v1284
      %v1286 = vpop.f32.mrb[0].mxu0
      %v1287 = vadd.f32 %v1085, %v1286
      %v1288 = vpop.f32.mrb[0].mxu0
      %1289 = vmatprep.mubr.f32.mxu0 0.0
      %v1290 = vand.u32 %v261, 4294901760
      %1291 = vmatmul.mubr.f32.gmra.mrb[0].mxu0 %v1290
      %v1292 = vpop.f32.mrb[0].mxu0
      %v1293 = vadd.f32 %v1093, %v1292
      %v1294 = vpop.f32.mrb[0].mxu0
      %1295 = vmatprep.mubr.f32.mxu0 0.0
      %v1296 = vand.u32 %v264, 4294901760
      %1297 = vmatmul.mubr.f32.gmra.mrb[0].mxu0 %v1296
      %v1298 = vpop.f32.mrb[0].mxu0
      %v1299 = vadd.f32 %v1101, %v1298
      %v1300 = vpop.f32.mrb[0].mxu0
      %1301 = vmatprep.mubr.f32.mxu0 0.0
      %v1302 = vand.u32 %v267, 4294901760
      %1303 = vmatmul.mubr.f32.gmra.mrb[0].mxu0 %v1302
      %v1304 = vpop.f32.mrb[0].mxu0
      %v1305 = vadd.f32 %v1109, %v1304
      %v1306 = vpop.f32.mrb[0].mxu0
      %1307 = vmatprep.mubr.f32.mxu0 0.0
      %v1308 = vand.u32 %v270, 4294901760
      %1309 = vmatmul.mubr.f32.gmra.mrb[0].mxu0 %v1308
      %v1310 = vpop.f32.mrb[0].mxu0
      %v1311 = vadd.f32 %v1117, %v1310
      %v1312 = vpop.f32.mrb[0].mxu0
      %1313 = vmatprep.mubr.f32.mxu0 0.0
      %v1314 = vand.u32 %v273, 4294901760
      %1315 = vmatmul.mubr.f32.gmra.mrb[0].mxu0 %v1314
      %v1316 = vpop.f32.mrb[0].mxu0
      %v1317 = vadd.f32 %v1125, %v1316
      %v1318 = vpop.f32.mrb[0].mxu0
      %1319 = vmatprep.mubr.f32.mxu0 0.0
      %v1320 = vand.u32 %v276, 4294901760
      %1321 = vmatmul.mubr.f32.gmra.mrb[0].mxu0 %v1320
      %v1322 = vpop.f32.mrb[0].mxu0
      %v1323 = vadd.f32 %v1133, %v1322
      %v1324 = vpop.f32.mrb[0].mxu0
      %1325 = vmatprep.mubr.f32.mxu0 0.0
      %v1326 = vand.u32 %v279, 4294901760
      %1327 = vmatmul.mubr.f32.gmra.mrb[0].mxu0 %v1326
      %v1328 = vpop.f32.mrb[0].mxu0
      %v1329 = vadd.f32 %v1141, %v1328
      %v1330 = vpop.f32.mrb[0].mxu0
      %1331 = vdwg.mxu0
      %1332 = vmatprep.subr.mxu0 0.0
      %v1333 = vand.u32 %v214, 4294901760
      %1334 = vmatpush1.msra.mxu0 %v1333
      %1335 = vmatprep.subr.mxu0 0.0
      %v1336 = vand.u32 %v215, 4294901760
      %1337 = vmatpush1.msra.mxu0 %v1336
      %1338 = vmatprep.subr.mxu0 0.0
      %v1339 = vand.u32 %v216, 4294901760
      %1340 = vmatpush1.msra.mxu0 %v1339
      %1341 = vmatprep.subr.mxu0 0.0
      %v1342 = vand.u32 %v217, 4294901760
      %1343 = vmatpush1.msra.mxu0 %v1342
      %1344 = vmatprep.subr.mxu0 0.0
      %v1345 = vand.u32 %v218, 4294901760
      %1346 = vmatpush1.msra.mxu0 %v1345
      %1347 = vmatprep.subr.mxu0 0.0
      %1348 = vmatpush1.msra.mxu0 0.0
      %1349 = vmatprep.subr.mxu0 0.0
      %1350 = vmatpush1.msra.mxu0 0.0
      %1351 = vmatprep.subr.mxu0 0.0
      %1352 = vmatpush1.msra.mxu0 0.0
      %1353 = vmatprep.subr.mxu0 0.0
      %1354 = vmatpush1.msra.mxu0 0.0
      %1355 = vmatprep.subr.mxu0 0.0
      %1356 = vmatpush1.msra.mxu0 0.0
      %1357 = vmatprep.subr.mxu0 0.0
      %1358 = vmatpush1.msra.mxu0 0.0
      %1359 = vmatprep.subr.mxu0 0.0
      %1360 = vmatpush1.msra.mxu0 0.0
      %1361 = vmatprep.subr.mxu0 0.0
      %1362 = vmatpush1.msra.mxu0 0.0
      %1363 = vmatprep.subr.mxu0 0.0
      %1364 = vmatpush1.msra.mxu0 0.0
      %1365 = vmatprep.subr.mxu0 0.0
      %1366 = vmatpush1.msra.mxu0 0.0
      %1367 = vmatprep.subr.mxu0 0.0
      %1368 = vmatpush1.msra.mxu0 0.0
      %1369 = vmatprep.subr.mxu0 0.0
      %1370 = vmatpush1.msra.mxu0 0.0
      %1371 = vmatprep.subr.mxu0 0.0
      %1372 = vmatpush1.msra.mxu0 0.0
      %1373 = vmatprep.subr.mxu0 0.0
      %1374 = vmatpush1.msra.mxu0 0.0
      %1375 = vmatprep.subr.mxu0 0.0
      %1376 = vmatpush1.msra.mxu0 0.0
      %1377 = vmatprep.subr.mxu0 0.0
      %1378 = vmatpush1.msra.mxu0 0.0
      %1379 = vmatprep.subr.mxu0 0.0
      %1380 = vmatpush1.msra.mxu0 0.0
      %1381 = vmatprep.subr.mxu0 0.0
      %1382 = vmatpush1.msra.mxu0 0.0
      %1383 = vmatprep.subr.mxu0 0.0
      %1384 = vmatpush1.msra.mxu0 0.0
      %1385 = vmatprep.subr.mxu0 0.0
      %1386 = vmatpush1.msra.mxu0 0.0
      %1387 = vmatprep.subr.mxu0 0.0
      %1388 = vmatpush1.msra.mxu0 0.0
      %1389 = vmatprep.subr.mxu0 0.0
      %1390 = vmatpush1.msra.mxu0 0.0
      %1391 = vmatprep.subr.mxu0 0.0
      %1392 = vmatpush1.msra.mxu0 0.0
      %1393 = vmatprep.subr.mxu0 0.0
      %1394 = vmatpush1.msra.mxu0 0.0
      %1395 = vmatprep.subr.mxu0 0.0
      %1396 = vmatpush1.msra.mxu0 0.0
      %1397 = vmatprep.subr.mxu0 0.0
      %1398 = vmatpush1.msra.mxu0 0.0
      %1399 = vmatprep.subr.mxu0 0.0
      %1400 = vmatpush1.msra.mxu0 0.0
      %1401 = vmatprep.mubr.f32.mxu0 0.0
      %v1402 = vand.u32 %v228, 4294901760
      %1403 = vmatmul.mubr.f32.gmra.mrb[0].mxu0 %v1402
      %v1404 = vpop.f32.mrb[0].mxu0
      %v1405 = vadd.f32 %v1227, %v1404
      %v1406 = vpop.f32.mrb[0].mxu0
      %1407 = vmatprep.mubr.f32.mxu0 0.0
      %v1408 = vand.u32 %v231, 4294901760
      %1409 = vmatmul.mubr.f32.gmra.mrb[0].mxu0 %v1408
      %v1410 = vpop.f32.mrb[0].mxu0
      %v1411 = vadd.f32 %v1233, %v1410
      %v1412 = vpop.f32.mrb[0].mxu0
      %1413 = vmatprep.mubr.f32.mxu0 0.0
      %v1414 = vand.u32 %v234, 4294901760
      %1415 = vmatmul.mubr.f32.gmra.mrb[0].mxu0 %v1414
      %v1416 = vpop.f32.mrb[0].mxu0
      %v1417 = vadd.f32 %v1239, %v1416
      %v1418 = vpop.f32.mrb[0].mxu0
      %1419 = vmatprep.mubr.f32.mxu0 0.0
      %v1420 = vand.u32 %v237, 4294901760
      %1421 = vmatmul.mubr.f32.gmra.mrb[0].mxu0 %v1420
      %v1422 = vpop.f32.mrb[0].mxu0
      %v1423 = vadd.f32 %v1245, %v1422
      %v1424 = vpop.f32.mrb[0].mxu0
      %1425 = vmatprep.mubr.f32.mxu0 0.0
      %v1426 = vand.u32 %v240, 4294901760
      %1427 = vmatmul.mubr.f32.gmra.mrb[0].mxu0 %v1426
      %v1428 = vpop.f32.mrb[0].mxu0
      %v1429 = vadd.f32 %v1251, %v1428
      %v1430 = vpop.f32.mrb[0].mxu0
      %1431 = vmatprep.mubr.f32.mxu0 0.0
      %v1432 = vand.u32 %v243, 4294901760
      %1433 = vmatmul.mubr.f32.gmra.mrb[0].mxu0 %v1432
      %v1434 = vpop.f32.mrb[0].mxu0
      %v1435 = vadd.f32 %v1257, %v1434
      %v1436 = vpop.f32.mrb[0].mxu0
      %1437 = vmatprep.mubr.f32.mxu0 0.0
      %v1438 = vand.u32 %v246, 4294901760
      %1439 = vmatmul.mubr.f32.gmra.mrb[0].mxu0 %v1438
      %v1440 = vpop.f32.mrb[0].mxu0
      %v1441 = vadd.f32 %v1263, %v1440
      %v1442 = vpop.f32.mrb[0].mxu0
      %1443 = vmatprep.mubr.f32.mxu0 0.0
      %v1444 = vand.u32 %v249, 4294901760
      %1445 = vmatmul.mubr.f32.gmra.mrb[0].mxu0 %v1444
      %v1446 = vpop.f32.mrb[0].mxu0
      %v1447 = vadd.f32 %v1269, %v1446
      %v1448 = vpop.f32.mrb[0].mxu0
      %1449 = vmatprep.mubr.f32.mxu0 0.0
      %v1450 = vand.u32 %v252, 4294901760
      %1451 = vmatmul.mubr.f32.gmra.mrb[0].mxu0 %v1450
      %v1452 = vpop.f32.mrb[0].mxu0
      %v1453 = vadd.f32 %v1275, %v1452
      %v1454 = vpop.f32.mrb[0].mxu0
      %1455 = vmatprep.mubr.f32.mxu0 0.0
      %v1456 = vand.u32 %v255, 4294901760
      %1457 = vmatmul.mubr.f32.gmra.mrb[0].mxu0 %v1456
      %v1458 = vpop.f32.mrb[0].mxu0
      %v1459 = vadd.f32 %v1281, %v1458
      %v1460 = vpop.f32.mrb[0].mxu0
      %1461 = vmatprep.mubr.f32.mxu0 0.0
      %v1462 = vand.u32 %v258, 4294901760
      %1463 = vmatmul.mubr.f32.gmra.mrb[0].mxu0 %v1462
      %v1464 = vpop.f32.mrb[0].mxu0
      %v1465 = vadd.f32 %v1287, %v1464
      %v1466 = vpop.f32.mrb[0].mxu0
      %1467 = vmatprep.mubr.f32.mxu0 0.0
      %v1468 = vand.u32 %v261, 4294901760
      %1469 = vmatmul.mubr.f32.gmra.mrb[0].mxu0 %v1468
      %v1470 = vpop.f32.mrb[0].mxu0
      %v1471 = vadd.f32 %v1293, %v1470
      %v1472 = vpop.f32.mrb[0].mxu0
      %1473 = vmatprep.mubr.f32.mxu0 0.0
      %v1474 = vand.u32 %v264, 4294901760
      %1475 = vmatmul.mubr.f32.gmra.mrb[0].mxu0 %v1474
      %v1476 = vpop.f32.mrb[0].mxu0
      %v1477 = vadd.f32 %v1299, %v1476
      %v1478 = vpop.f32.mrb[0].mxu0
      %1479 = vmatprep.mubr.f32.mxu0 0.0
      %v1480 = vand.u32 %v267, 4294901760
      %1481 = vmatmul.mubr.f32.gmra.mrb[0].mxu0 %v1480
      %v1482 = vpop.f32.mrb[0].mxu0
      %v1483 = vadd.f32 %v1305, %v1482
      %v1484 = vpop.f32.mrb[0].mxu0
      %1485 = vmatprep.mubr.f32.mxu0 0.0
      %v1486 = vand.u32 %v270, 4294901760
      %1487 = vmatmul.mubr.f32.gmra.mrb[0].mxu0 %v1486
      %v1488 = vpop.f32.mrb[0].mxu0
      %v1489 = vadd.f32 %v1311, %v1488
      %v1490 = vpop.f32.mrb[0].mxu0
      %1491 = vmatprep.mubr.f32.mxu0 0.0
      %v1492 = vand.u32 %v273, 4294901760
      %1493 = vmatmul.mubr.f32.gmra.mrb[0].mxu0 %v1492
      %v1494 = vpop.f32.mrb[0].mxu0
      %v1495 = vadd.f32 %v1317, %v1494
      %v1496 = vpop.f32.mrb[0].mxu0
      %1497 = vmatprep.mubr.f32.mxu0 0.0
      %v1498 = vand.u32 %v276, 4294901760
      %1499 = vmatmul.mubr.f32.gmra.mrb[0].mxu0 %v1498
      %v1500 = vpop.f32.mrb[0].mxu0
      %v1501 = vadd.f32 %v1323, %v1500
      %v1502 = vpop.f32.mrb[0].mxu0
      %1503 = vmatprep.mubr.f32.mxu0 0.0
      %v1504 = vand.u32 %v279, 4294901760
      %1505 = vmatmul.mubr.f32.gmra.mrb[0].mxu0 %v1504
      %v1506 = vpop.f32.mrb[0].mxu0
      %v1507 = vadd.f32 %v1329, %v1506
      %v1508 = vpop.f32.mrb[0].mxu0
      %1509 = vdwg.mxu0
      %v1510 = vsub.f32 0.0, %v1405
      %v1511 = vsub.f32 0.0, %v1411
      %v1512 = vsub.f32 0.0, %v1417
      %v1513 = vsub.f32 0.0, %v1423
      %v1514 = vsub.f32 0.0, %v1429
      %v1515 = vsub.f32 0.0, %v1435
      %v1516 = vsub.f32 0.0, %v1441
      %v1517 = vsub.f32 0.0, %v1447
      %v1518 = vsub.f32 0.0, %v1453
      %v1519 = vsub.f32 0.0, %v1459
      %v1520 = vsub.f32 0.0, %v1465
      %v1521 = vsub.f32 0.0, %v1471
      %v1522 = vsub.f32 0.0, %v1477
      %v1523 = vsub.f32 0.0, %v1483
      %v1524 = vsub.f32 0.0, %v1489
      %v1525 = vsub.f32 0.0, %v1495
      %v1526 = vsub.f32 0.0, %v1501
      %v1527 = vsub.f32 0.0, %v1507
      %v1528 = vmul.f32 %v1510, 1.442695
      %v1529 = vpow.pop %v1528
      %v1530 = vmul.f32 %v1511, 1.442695
      %v1531 = vpow.pop %v1530
      %v1532 = vmul.f32 %v1512, 1.442695
      %v1533 = vpow.pop %v1532
      %v1534 = vmul.f32 %v1513, 1.442695
      %v1535 = vpow.pop %v1534
      %v1536 = vmul.f32 %v1514, 1.442695
      %v1537 = vpow.pop %v1536
      %v1538 = vmul.f32 %v1515, 1.442695
      %v1539 = vpow.pop %v1538
      %v1540 = vmul.f32 %v1516, 1.442695
      %v1541 = vpow.pop %v1540
      %v1542 = vmul.f32 %v1517, 1.442695
      %v1543 = vpow.pop %v1542
      %v1544 = vmul.f32 %v1518, 1.442695
      %v1545 = vpow.pop %v1544
      %v1546 = vmul.f32 %v1519, 1.442695
      %v1547 = vpow.pop %v1546
      %v1548 = vmul.f32 %v1520, 1.442695
      %v1549 = vpow.pop %v1548
      %v1550 = vmul.f32 %v1521, 1.442695
      %v1551 = vpow.pop %v1550
      %v1552 = vmul.f32 %v1522, 1.442695
      %v1553 = vpow.pop %v1552
      %v1554 = vmul.f32 %v1523, 1.442695
      %v1555 = vpow.pop %v1554
      %v1556 = vmul.f32 %v1524, 1.442695
      %v1557 = vpow.pop %v1556
      %v1558 = vmul.f32 %v1525, 1.442695
      %v1559 = vpow.pop %v1558
      %v1560 = vmul.f32 %v1526, 1.442695
      %v1561 = vpow.pop %v1560
      %v1562 = vmul.f32 %v1527, 1.442695
      %v1563 = vpow.pop %v1562
      %v1564 = vadd.f32 %v1529, 1.0
      %v1565 = vadd.f32 %v1531, 1.0
      %v1566 = vadd.f32 %v1533, 1.0
      %v1567 = vadd.f32 %v1535, 1.0
      %v1568 = vadd.f32 %v1537, 1.0
      %v1569 = vadd.f32 %v1539, 1.0
      %v1570 = vadd.f32 %v1541, 1.0
      %v1571 = vadd.f32 %v1543, 1.0
      %v1572 = vadd.f32 %v1545, 1.0
      %v1573 = vadd.f32 %v1547, 1.0
      %v1574 = vadd.f32 %v1549, 1.0
      %v1575 = vadd.f32 %v1551, 1.0
      %v1576 = vadd.f32 %v1553, 1.0
      %v1577 = vadd.f32 %v1555, 1.0
      %v1578 = vadd.f32 %v1557, 1.0
      %v1579 = vadd.f32 %v1559, 1.0
      %v1580 = vadd.f32 %v1561, 1.0
      %v1581 = vadd.f32 %v1563, 1.0
      %v1582 = vrcp.pop %v1564
      %v1583 = vmul.f32 1.0, %v1582
      %v1584 = vrcp.pop %v1565
      %v1585 = vmul.f32 1.0, %v1584
      %v1586 = vrcp.pop %v1566
      %v1587 = vmul.f32 1.0, %v1586
      %v1588 = vrcp.pop %v1567
      %v1589 = vmul.f32 1.0, %v1588
      %v1590 = vrcp.pop %v1568
      %v1591 = vmul.f32 1.0, %v1590
      %v1592 = vrcp.pop %v1569
      %v1593 = vmul.f32 1.0, %v1592
      %v1594 = vrcp.pop %v1570
      %v1595 = vmul.f32 1.0, %v1594
      %v1596 = vrcp.pop %v1571
      %v1597 = vmul.f32 1.0, %v1596
      %v1598 = vrcp.pop %v1572
      %v1599 = vmul.f32 1.0, %v1598
      %v1600 = vrcp.pop %v1573
      %v1601 = vmul.f32 1.0, %v1600
      %v1602 = vrcp.pop %v1574
      %v1603 = vmul.f32 1.0, %v1602
      %v1604 = vrcp.pop %v1575
      %v1605 = vmul.f32 1.0, %v1604
      %v1606 = vrcp.pop %v1576
      %v1607 = vmul.f32 1.0, %v1606
      %v1608 = vrcp.pop %v1577
      %v1609 = vmul.f32 1.0, %v1608
      %v1610 = vrcp.pop %v1578
      %v1611 = vmul.f32 1.0, %v1610
      %v1612 = vrcp.pop %v1579
      %v1613 = vmul.f32 1.0, %v1612
      %v1614 = vrcp.pop %v1580
      %v1615 = vmul.f32 1.0, %v1614
      %v1616 = vrcp.pop %v1581
      %v1617 = vmul.f32 1.0, %v1616
      %v1618 = vmul.f32 %v1405, %v1583
      %v1619 = vmul.f32 %v1411, %v1585
      %v1620 = vmul.f32 %v1417, %v1587
      %v1621 = vmul.f32 %v1423, %v1589
      %v1622 = vmul.f32 %v1429, %v1591
      %v1623 = vmul.f32 %v1435, %v1593
      %v1624 = vmul.f32 %v1441, %v1595
      %v1625 = vmul.f32 %v1447, %v1597
      %v1626 = vmul.f32 %v1453, %v1599
      %v1627 = vmul.f32 %v1459, %v1601
      %v1628 = vmul.f32 %v1465, %v1603
      %v1629 = vmul.f32 %v1471, %v1605
      %v1630 = vmul.f32 %v1477, %v1607
      %v1631 = vmul.f32 %v1483, %v1609
      %v1632 = vmul.f32 %v1489, %v1611
      %v1633 = vmul.f32 %v1495, %v1613
      %v1634 = vmul.f32 %v1501, %v1615
      %v1635 = vmul.f32 %v1507, %v1617
      %1636 = vst [vmem:[%s192] sm:$0xff] %v1618
      %1637 = vst [vmem:[%s192 + $0x8] sm:$0xff] %v1619
      %1638 = vst [vmem:[%s192 + $0x10] sm:$0xff] %v1620
      %1639 = vst [vmem:[%s192 + $0x18] sm:$0xff] %v1621
      %1640 = vst [vmem:[%s192 + $0x20] sm:$0xff] %v1622
      %1641 = vst [vmem:[%s192 + $0x28] sm:$0xff] %v1623
      %1642 = vst [vmem:[%s192 + $0x30] sm:$0xff] %v1624
      %1643 = vst [vmem:[%s192 + $0x38] sm:$0xff] %v1625
      %1644 = vst [vmem:[%s192 + $0x40] sm:$0xff] %v1626
      %1645 = vst [vmem:[%s192 + $0x48] sm:$0xff] %v1627
      %1646 = vst [vmem:[%s192 + $0x50] sm:$0xff] %v1628
      %1647 = vst [vmem:[%s192 + $0x58] sm:$0xff] %v1629
      %1648 = vst [vmem:[%s192 + $0x60] sm:$0xff] %v1630
      %1649 = vst [vmem:[%s192 + $0x68] sm:$0xff] %v1631
      %1650 = vst [vmem:[%s192 + $0x70] sm:$0xff] %v1632
      %1651 = vst [vmem:[%s192 + $0x78] sm:$0xff] %v1633
      %1652 = vst [vmem:[%s192 + $0x80] sm:$0xff] %v1634
      %1653 = vst [vmem:[%s192 + $0x88] sm:$0xff] %v1635
      %s1654 = smul.u32 18, %s19
      %p1655 = scmp.lt.s32.totalorder %s18, 1
      %s1656 = scalar_select %p1655, %s18, 1
      %p1657 = scmp.lt.s32.totalorder %s1654, 35
      %s1658 = scalar_select %p1657, %s1654, 35
      %s1659 = smul.addr %s1656, 36
      %s1660 = sadd.s32 %s1658, %s1659
      %s1661 = smul.addr %s1660, 8
      %s1662 = scalar_lea.vmem %s3, %s1661
      // Predicated region
      $region33: #{conv_forward.1} parent=31 // pred_check
        %p1663 = pneg %p114
      $region34: #{conv_forward.1} parent=31 // pred_check_branch
        %1665 = sbr.rel (%p1663) target = $region36
      $region35: #{conv_forward.1} parent=31 // pred_region
        %s1666 = smul.u32 18, %s19
      $region36: #{conv_forward.1} parent=31 // pred_fallthru
        _
    $region32: #{conv_forward.1} parent=5 // pred_fallthru
      _
    %p1667 = scmp.le.s32.totalorder 2, %s9
    // Predicated region
    $region37: #{conv_forward.1} parent=5 // pred_check
      %p1668 = pneg %p1667
    $region38: #{conv_forward.1} parent=5 // pred_check_branch
      %1670 = sbr.rel (%p1668) target = $region40
    $region39: #{conv_forward.1} parent=5 // pred_region
      %s1671 = ssub.s32 %s9, 2
      // Predicated region
      $region41: #{conv_forward.1} parent=39 // pred_check
        %p1672 = pneg %p120
      $region42: #{conv_forward.1} parent=39 // pred_check_branch
        %1674 = sbr.rel (%p1672) target = $region44
      $region43: #{conv_forward.1} parent=39 // pred_region
        %s1675 = smul.u32 18, %s21
        %p1676 = scmp.lt.s32.totalorder %s20, 1
        %s1677 = scalar_select %p1676, %s20, 1
        %p1678 = scmp.lt.s32.totalorder %s1675, 35
        %s1679 = scalar_select %p1678, %s1675, 35
        %s1680 = smul.addr %s1677, 36
        %s1681 = sadd.s32 %s1679, %s1680
        %s1682 = smul.addr %s1681, 8
        %s1683 = scalar_lea.vmem %s3, %s1682
      $region44: #{conv_forward.1} parent=39 // pred_fallthru
        _
    $region40: #{conv_forward.1} parent=5 // pred_fallthru
      _
  $region6: #{conv_forward.1} parent=0 // loop_footer
    %s13 = sadd.s32 1, %s9
  $region7: #{conv_forward.1} parent=0 // loop_footer_branch
    %8 = sbr.rel target = $region3
  $region8: #{conv_forward.1} parent=0 // loop_exit
    _

</llo_original>
